<compile_context>
chip_gen: v7x
topology: tpu7x:2x2x1
jax: 0.10.0
libtpu: 0.0.40
codegen_flags: <defaults>
</compile_context>

<pallas_src>
import functools

import numpy as np
import jax
import jax.numpy as jnp
from jax.experimental import pallas as pl
from jax.experimental.pallas import tpu as pltpu


_VMEM_LIMIT_BYTES = 48 * 1024 * 1024   # explicit scoped-VMEM cap (fits v7x's 64 MiB)


# ----------------------------------------------------------------------------
# Pallas kernels
# ----------------------------------------------------------------------------
def mlp_kernel(x_ref, w1_ref, b1_ref, w2_ref, b2_ref, o_ref):
    """Transposed 2-layer MLP on one column tile.

    x_ref: (fin, tile_n)   w1: (h1, fin)   w2: (c, h1)   biases: (., 1) fp32
    o_ref: (c, tile_n)  -- lane-dense output (long axis last).
    """
    h = jnp.dot(w1_ref[...], x_ref[...], preferred_element_type=jnp.float32)
    h = jnp.maximum(h + b1_ref[...], 0.0)            # bias + ReLU in fp32
    h = h.astype(w2_ref.dtype)                       # back to bf16 for the MXU
    o = jnp.dot(w2_ref[...], h, preferred_element_type=jnp.float32)
    o = o + b2_ref[...]
    o_ref[...] = o.astype(o_ref.dtype)


def conv3x3_tap_kernel(x_ref, w_ref, b_ref, o_ref, *, row_stride, apply_relu):
    """3x3 same conv on one row tile, folded into a single K = 9*Cin matmul.

    x_ref: (1, 1, Cin, L_in)    zero-padded image rows, row-flattened with padded
                                width row_stride = W+2 (no channel duplication)
    w_ref: (Cout, 9*Cin)        folded weights, K ordering (dy, dx, cin)
    b_ref: (Cout, 1)            fp32 bias
    o_ref: (1, 1, Cout, TR*(W+2))  lane-dense tile; 2 junk cols per row dropped by glue
    """
    n_out = o_ref.shape[-1]
    x = x_ref[0, 0]                                  # (Cin, L_in)
    # The 9 taps (dy, dx) are shifted static slices of the same flat VMEM block;
    # stacking them on the contraction axis folds all 9 taps into ONE MXU matmul.
    taps = [x[:, dy * row_stride + dx: dy * row_stride + dx + n_out]
            for dy in range(3) for dx in range(3)]
    patch = jnp.concatenate(taps, axis=0)            # (9*Cin, TR*(W+2))
    acc = jnp.dot(w_ref[...], patch, preferred_element_type=jnp.float32)
    acc = acc + b_ref[...]
    if apply_relu:
        acc = jnp.maximum(acc, 0.0)
    o_ref[0, 0] = acc.astype(o_ref.dtype)


# ----------------------------------------------------------------------------
# Tile pickers
# ----------------------------------------------------------------------------
def _pick_tile_n(n, target=2048):
    """MLP column tile: single tile if small (no pad, no 128-constraint); else a
    128-multiple dividing n; else pad n up to a multiple of `target` (rare)."""
    if n <= target:
        return n, n
    for t in range(target, 127, -128):
        if n % t == 0:
            return t, n
    n_pad = pl.cdiv(n, target) * target
    return target, n_pad


def _pick_conv_tile_rows(h, wp, cin, cout, budget_bytes=24 * 1024 * 1024):
    """Rows per conv tile: whole image if the in-kernel working set (double-buffered
    bf16 input + 9x bf16 patch + fp32 acc + double-buffered bf16 output) fits the
    budget, else as many rows as fit."""
    per_row = wp * (2 * 2 * cin        # input block, 2 buffers, bf16
                    + 9 * 2 * cin      # folded patch (VMEM value)
                    + 4 * cout         # fp32 accumulator value
                    + 2 * 2 * cout)    # output block, 2 buffers, bf16
    rows = int(budget_bytes // max(per_row, 1))
    if rows >= h:
        return h
    return max(1, rows)


# ----------------------------------------------------------------------------
# Pallas wrappers
# ----------------------------------------------------------------------------
def mlp2_pallas(x_t, w1, b1, w2, b2, *, dtype=jnp.bfloat16, out_dtype=None):
    """Transposed 2-layer MLP.  x_t: (fin, N);  w1: (h1, fin);  w2: (c, h1)."""
    fin, n = x_t.shape
    h1 = w1.shape[0]
    c = w2.shape[0]
    out_dtype = out_dtype if out_dtype is not None else dtype

    tile_n, n_pad = _pick_tile_n(n)
    xw = x_t.astype(dtype)
    if n_pad != n:                 # rare fallback; normally no extra HBM pad copy
        xw = jnp.pad(xw, ((0, 0), (0, n_pad - n)))

    out = pl.pallas_call(
        mlp_kernel,
        out_shape=jax.ShapeDtypeStruct((c, n_pad), out_dtype),
        grid=(n_pad // tile_n,),
        in_specs=[
            pl.BlockSpec((fin, tile_n), lambda i: (0, i)),
            pl.BlockSpec((h1, fin), lambda i: (0, 0)),
            pl.BlockSpec((h1, 1), lambda i: (0, 0)),
            pl.BlockSpec((c, h1), lambda i: (0, 0)),
            pl.BlockSpec((c, 1), lambda i: (0, 0)),
        ],
        out_specs=pl.BlockSpec((c, tile_n), lambda i: (0, i)),
        compiler_params=pltpu.CompilerParams(
            dimension_semantics=("parallel",),
            vmem_limit_bytes=_VMEM_LIMIT_BYTES),
    )(xw, w1.astype(dtype), b1.reshape(h1, 1).astype(jnp.float32),
      w2.astype(dtype), b2.reshape(c, 1).astype(jnp.float32))
    return out[:, :n] if n_pad != n else out


def conv3x3_planar_pallas(x, w, b, *, apply_relu, dtype=jnp.bfloat16,
                          out_dtype=None, tile_rows=None):
    """3x3 conv, stride 1, zero pad 1, on planar x: (B, Cin, H, W) -> (B, Cout, H, W).

    Glue only zero-pads (no channel unfold / im2col): the kernel works on rows flattened
    at padded width W+2 and computes W+2 outputs per row, of which the last 2 are junk
    (flat-layout wrap) and get sliced off here.
    """
    bsz, cin, h, wdt = x.shape
    cout = w.shape[-1]
    wp = wdt + 2
    out_dtype = out_dtype if out_dtype is not None else x.dtype

    if tile_rows is None:
        tile_rows = _pick_conv_tile_rows(h, wp, cin, cout)
    n_tiles = pl.cdiv(h, tile_rows)
    h_pad = n_tiles * tile_rows

    xw = x.astype(dtype)
    # zero pad: 1 top row, (1 + h_pad - h) bottom rows + 1 extra row so every halo'd
    # row-tile slice (and the kernel's last shifted tap) stays in range; 1 col each side.
    xp = jnp.pad(xw, ((0, 0), (0, 0), (1, 2 + h_pad - h), (1, 1)))   # (B,Cin,h_pad+3,wp)
    x_flat = xp.reshape(bsz, cin, (h_pad + 3) * wp)

    n_out = tile_rows * wp
    l_in = (tile_rows + 3) * wp                       # TR output rows + 2 halo + 1 spare

    if n_tiles == 1:
        tiles = x_flat[:, None]                       # (B, 1, Cin, L_in) -- no copy
    else:
        # halo'd row tiles: 3 duplicated rows per tile (cheap vs. any channel unfold)
        tiles = jnp.stack(
            [x_flat[:, :, t * tile_rows * wp: t * tile_rows * wp + l_in]
             for t in range(n_tiles)], axis=1)        # (B, nt, Cin, L_in)

    wbig = w.reshape(9 * cin, cout).T.astype(dtype)   # (Cout, 9*Cin), K = (dy, dx, cin)
    bcol = b.reshape(cout, 1).astype(jnp.float32)

    out = pl.pallas_call(
        functools.partial(conv3x3_tap_kernel, row_stride=wp, apply_relu=apply_relu),
        out_shape=jax.ShapeDtypeStruct((bsz, n_tiles, cout, n_out), out_dtype),
        grid=(bsz, n_tiles),
        in_specs=[
            pl.BlockSpec((1, 1, cin, l_in), lambda bi, ti: (bi, ti, 0, 0)),
            pl.BlockSpec((cout, 9 * cin), lambda bi, ti: (0, 0)),
            pl.BlockSpec((cout, 1), lambda bi, ti: (0, 0)),
        ],
        out_specs=pl.BlockSpec((1, 1, cout, n_out), lambda bi, ti: (bi, ti, 0, 0)),
        compiler_params=pltpu.CompilerParams(
            dimension_semantics=("parallel", "parallel"),
            vmem_limit_bytes=_VMEM_LIMIT_BYTES),
    )(tiles, wbig, bcol)

    out = jnp.transpose(out, (0, 2, 1, 3)).reshape(bsz, cout, h_pad, wp)
    return out[:, :, :h, :wdt]                        # drop pad rows + 2 junk cols/row


def nearest_interp_planar(x, out_size):
    """torch F.interpolate(mode='nearest') on planar (B, C, H, W): pure index gather."""
    _, _, h, w = x.shape
    rows = (jnp.arange(out_size) * h) // out_size
    cols = (jnp.arange(out_size) * w) // out_size
    return x[:, :, rows[:, None], cols[None, :]]


# ----------------------------------------------------------------------------
# TriplaneEncoder
# ----------------------------------------------------------------------------
class TriplaneEncoderPallas:
    """JAX/Pallas port of TriplaneEncoder.  Parameters follow torch defaults
    (uniform +-1/sqrt(fan_in)); Linear weights stored (out, in), conv (kh, kw, Cin, Cout)."""

    def __init__(self, input_vid_res, tri_plane_res, key, dtype=jnp.bfloat16):
        ch, r, c, d = input_vid_res
        ct = tri_plane_res[0]
        self.input_vid_res = input_vid_res
        self.tri_plane_res = tri_plane_res
        self.dtype = dtype
        conv_layers = 2
        self.down_res = np.linspace(r, tri_plane_res[1],
                                    conv_layers + 1)[1:].astype(int)

        ks = jax.random.split(key, 8)

        def lin(k, fin, fout):
            k1, k2 = jax.random.split(k)
            bnd = 1.0 / np.sqrt(fin)
            return (jax.random.uniform(k1, (fout, fin), jnp.float32, -bnd, bnd),
                    jax.random.uniform(k2, (fout,), jnp.float32, -bnd, bnd))

        def conv(k, cin, cout):
            k1, k2 = jax.random.split(k)
            bnd = 1.0 / np.sqrt(cin * 9)
            return (jax.random.uniform(k1, (3, 3, cin, cout), jnp.float32, -bnd, bnd),
                    jax.random.uniform(k2, (cout,), jnp.float32, -bnd, bnd))

        # (w1, b1, w2, b2) per axis-preserving MLP
        self.rc = lin(ks[0], d * ch, ct) + lin(ks[1], ct, ct)
        self.cd = lin(ks[2], r * ch, ct) + lin(ks[3], ct, ct)
        self.rd = lin(ks[4], c * ch, ct) + lin(ks[5], ct, ct)
        self.conv1 = conv(ks[6], 3 * ct, 3 * ct)
        self.conv2 = conv(ks[7], 3 * ct, ct)

    def __call__(self, vid_vol):
        # vid_vol: (b, ch, row, col, dep) -> triplane: (b, 1, ch_t, row_t, col_t)
        b, ch, r, c, d = vid_vol.shape
        ct = self.tri_plane_res[0]
        dt = self.dtype

        # cast once so the three rearrange-transposes below move bf16, not fp32
        vv = vid_vol.astype(dt)

        # transposed MLP inputs (features, positions) -> lane-dense kernels
        # 'b ch row col dep -> (dep ch) (b row col)'
        x_rc = jnp.transpose(vv, (4, 1, 0, 2, 3)).reshape(d * ch, b * r * c)
        p_rc = mlp2_pallas(x_rc, *self.rc, dtype=dt).reshape(ct, b, r, c)
        # 'b ch row col dep -> (row ch) (b col dep)'
        x_cd = jnp.transpose(vv, (2, 1, 0, 3, 4)).reshape(r * ch, b * c * d)
        p_cd = mlp2_pallas(x_cd, *self.cd, dtype=dt).reshape(ct, b, c, d)
        # 'b ch row col dep -> (col ch) (b row dep)'
        x_rd = jnp.transpose(vv, (3, 1, 0, 2, 4)).reshape(c * ch, b * r * d)
        p_rd = mlp2_pallas(x_rd, *self.rd, dtype=dt).reshape(ct, b, r, d)

        # planar concat on the channel axis (requires row == col == dep, as in torch)
        planes = jnp.concatenate(
            [jnp.transpose(p_rc, (1, 0, 2, 3)),
             jnp.transpose(p_cd, (1, 0, 2, 3)),
             jnp.transpose(p_rd, (1, 0, 2, 3))], axis=1)           # (b, 3*ct, r, c)

        # enc_conv_down: conv(+fused relu) -> nearest -> conv -> nearest
        # (relu commutes with the nearest-neighbour gather, so fusing it into conv1
        #  before the interp is exact)
        # TODO(synk): fuse the nearest-interp row/col selection into the conv grid so the
        # conv only computes the pixels that survive the downsample.
        h = conv3x3_planar_pallas(planes, *self.conv1, apply_relu=True,
                                  dtype=dt, out_dtype=dt)
        h = nearest_interp_planar(h, int(self.down_res[0]))
        h = conv3x3_planar_pallas(h, *self.conv2, apply_relu=False,
                                  dtype=dt, out_dtype=jnp.float32)
        h = nearest_interp_planar(h, int(self.down_res[1]))        # (b, ct, s1, s1)

        # 'b (n_p fd) row col -> b n_p fd row col', n_p = 1 (already channel-major)
        return h[:, None]


# ----------------------------------------------------------------------------
if __name__ == "__main__":
    key = jax.random.PRNGKey(0)
    # small shapes consistent with the module (rows == cols == depth required by
    # the feature-axis concat in the reference forward pass)
    input_vid_res = (4, 8, 8, 8)     # ch, row, col, dep
    tri_plane_res = (16, 4, 4)       # ch_t, row_t, col_t
    batch = 2

    k_params, k_data = jax.random.split(key)
    enc = TriplaneEncoderPallas(input_vid_res, tri_plane_res, k_params)

    vid_vol = jax.random.normal(
        k_data, (batch,) + input_vid_res, dtype=jnp.float32)

    fwd = jax.jit(enc.__call__)
    triplane = jax.block_until_ready(fwd(vid_vol))

    expected = (batch, 1, tri_plane_res[0], tri_plane_res[1], tri_plane_res[2])
    assert triplane.shape == expected, (triplane.shape, expected)
    assert triplane.dtype == jnp.float32
    assert bool(jnp.all(jnp.isfinite(triplane)))
    print("KERNEL_OK")
</pallas_src>

<mosaic_0001>
module attributes {stable_mosaic.version = 11 : i64} {
  func.func @mlp_kernel(%arg0: i32, %arg1: memref<32x128xbf16, #tpu.memory_space<vmem>>, %arg2: memref<16x32xbf16, #tpu.memory_space<vmem>>, %arg3: memref<16x1xf32, #tpu.memory_space<vmem>>, %arg4: memref<16x16xbf16, #tpu.memory_space<vmem>>, %arg5: memref<16x1xf32, #tpu.memory_space<vmem>>, %arg6: memref<16x128xbf16, #tpu.memory_space<vmem>>) attributes {dimension_semantics = [#tpu.dimension_semantics<parallel>], iteration_bounds = array<i64: 1>, scalar_prefetch = 0 : i64, scratch_operands = 0 : i64, tpu.core_type = #tpu.core_type<tc>, window_params = [{transform_indices = @transform_0, window_bounds = array<i64: 32, 128>}, {pipeline_mode = #tpu.pipeline_mode<synchronous>, transform_indices = @transform_1, window_bounds = array<i64: 16, 32>}, {pipeline_mode = #tpu.pipeline_mode<synchronous>, transform_indices = @transform_2, window_bounds = array<i64: 16, 1>}, {pipeline_mode = #tpu.pipeline_mode<synchronous>, transform_indices = @transform_3, window_bounds = array<i64: 16, 16>}, {pipeline_mode = #tpu.pipeline_mode<synchronous>, transform_indices = @transform_4, window_bounds = array<i64: 16, 1>}, {transform_indices = @transform_5, window_bounds = array<i64: 16, 128>}]} {
    %c0 = arith.constant 0 : index
    %c0_0 = arith.constant 0 : index
    %0 = vector.load %arg2[%c0, %c0_0] : memref<16x32xbf16, #tpu.memory_space<vmem>>, vector<16x32xbf16>
    %c0_1 = arith.constant 0 : index
    %c0_2 = arith.constant 0 : index
    %1 = vector.load %arg1[%c0_1, %c0_2] : memref<32x128xbf16, #tpu.memory_space<vmem>>, vector<32x128xbf16>
    %cst = arith.constant dense<0.000000e+00> : vector<16x128xf32>
    %2 = tpu.matmul %0, %1, %cst {dimension_numbers = #tpu.dot_dimension_numbers<[1], [0], [0], [1], [0, 0, 1, 1], [], []>} : vector<16x32xbf16>, vector<32x128xbf16>, vector<16x128xf32> -> vector<16x128xf32>
    %c0_3 = arith.constant 0 : index
    %c0_4 = arith.constant 0 : index
    %3 = vector.load %arg3[%c0_3, %c0_4] : memref<16x1xf32, #tpu.memory_space<vmem>>, vector<16x1xf32>
    %4 = vector.broadcast %3 : vector<16x1xf32> to vector<16x128xf32>
    %5 = arith.addf %2, %4 : vector<16x128xf32>
    %cst_5 = arith.constant 0.000000e+00 : f32
    %6 = vector.broadcast %cst_5 : f32 to vector<16x128xf32>
    %7 = arith.maximumf %5, %6 : vector<16x128xf32>
    %8 = arith.truncf %7 : vector<16x128xf32> to vector<16x128xbf16>
    %c0_6 = arith.constant 0 : index
    %c0_7 = arith.constant 0 : index
    %9 = vector.load %arg4[%c0_6, %c0_7] : memref<16x16xbf16, #tpu.memory_space<vmem>>, vector<16x16xbf16>
    %cst_8 = arith.constant dense<0.000000e+00> : vector<16x128xf32>
    %10 = tpu.matmul %9, %8, %cst_8 {dimension_numbers = #tpu.dot_dimension_numbers<[1], [0], [0], [1], [0, 0, 1, 1], [], []>} : vector<16x16xbf16>, vector<16x128xbf16>, vector<16x128xf32> -> vector<16x128xf32>
    %c0_9 = arith.constant 0 : index
    %c0_10 = arith.constant 0 : index
    %11 = vector.load %arg5[%c0_9, %c0_10] : memref<16x1xf32, #tpu.memory_space<vmem>>, vector<16x1xf32>
    %12 = vector.broadcast %11 : vector<16x1xf32> to vector<16x128xf32>
    %13 = arith.addf %10, %12 : vector<16x128xf32>
    %14 = arith.truncf %13 : vector<16x128xf32> to vector<16x128xbf16>
    %c0_11 = arith.constant 0 : index
    %c0_12 = arith.constant 0 : index
    %15 = vector.load %arg6[%c0_11, %c0_12] : memref<16x128xbf16, #tpu.memory_space<vmem>>, vector<16x128xbf16>
    tpu.vector_store %arg6[%c0_11, %c0_12], %14 {strides = array<i32>} : memref<16x128xbf16, #tpu.memory_space<vmem>>, vector<16x128xbf16>,
    return
  }
  func.func @transform_0(%arg0: i32) -> (i32, i32) {
    %c0_i32 = arith.constant 0 : i32
    %c0_i32_0 = arith.constant 0 : i32
    return %c0_i32, %arg0 : i32, i32
  }
  func.func @transform_1(%arg0: i32) -> (i32, i32) {
    %c0_i32 = arith.constant 0 : i32
    %c0_i32_0 = arith.constant 0 : i32
    %c0_i32_1 = arith.constant 0 : i32
    return %c0_i32, %c0_i32_0 : i32, i32
  }
  func.func @transform_2(%arg0: i32) -> (i32, i32) {
    %c0_i32 = arith.constant 0 : i32
    %c0_i32_0 = arith.constant 0 : i32
    %c0_i32_1 = arith.constant 0 : i32
    return %c0_i32, %c0_i32_0 : i32, i32
  }
  func.func @transform_3(%arg0: i32) -> (i32, i32) {
    %c0_i32 = arith.constant 0 : i32
    %c0_i32_0 = arith.constant 0 : i32
    %c0_i32_1 = arith.constant 0 : i32
    return %c0_i32, %c0_i32_0 : i32, i32
  }
  func.func @transform_4(%arg0: i32) -> (i32, i32) {
    %c0_i32 = arith.constant 0 : i32
    %c0_i32_0 = arith.constant 0 : i32
    %c0_i32_1 = arith.constant 0 : i32
    return %c0_i32, %c0_i32_0 : i32, i32
  }
  func.func @transform_5(%arg0: i32) -> (i32, i32) {
    %c0_i32 = arith.constant 0 : i32
    %c0_i32_0 = arith.constant 0 : i32
    return %c0_i32, %arg0 : i32, i32
  }
}

module attributes {stable_mosaic.version = 11 : i64} {
  func.func @conv3x3_tap_kernel(%arg0: i32, %arg1: i32, %arg2: memref<1x1x48x110xbf16, #tpu.memory_space<vmem>>, %arg3: memref<48x432xbf16, #tpu.memory_space<vmem>>, %arg4: memref<48x1xf32, #tpu.memory_space<vmem>>, %arg5: memref<1x1x48x80xbf16, #tpu.memory_space<vmem>>) attributes {dimension_semantics = [#tpu.dimension_semantics<parallel>, #tpu.dimension_semantics<parallel>], iteration_bounds = array<i64: 2, 1>, scalar_prefetch = 0 : i64, scratch_operands = 0 : i64, tpu.core_type = #tpu.core_type<tc>, window_params = [{transform_indices = @transform_0, window_bounds = array<i64: 1, 1, 48, 110>}, {pipeline_mode = #tpu.pipeline_mode<synchronous>, transform_indices = @transform_1, window_bounds = array<i64: 48, 432>}, {pipeline_mode = #tpu.pipeline_mode<synchronous>, transform_indices = @transform_2, window_bounds = array<i64: 48, 1>}, {transform_indices = @transform_3, window_bounds = array<i64: 1, 1, 48, 80>}]} {
    %c0 = arith.constant 0 : index
    %c0_0 = arith.constant 0 : index
    %c0_1 = arith.constant 0 : index
    %c0_2 = arith.constant 0 : index
    %0 = vector.load %arg2[%c0, %c0_0, %c0_1, %c0_2] : memref<1x1x48x110xbf16, #tpu.memory_space<vmem>>, vector<1x1x48x110xbf16>
    %1 = vector.shape_cast %0 : vector<1x1x48x110xbf16> to vector<48x110xbf16>
    %2 = vector.extract_strided_slice %1 {offsets = [0, 0], sizes = [48, 80], strides = [1, 1]} : vector<48x110xbf16> to vector<48x80xbf16>
    %3 = vector.extract_strided_slice %1 {offsets = [0, 1], sizes = [48, 80], strides = [1, 1]} : vector<48x110xbf16> to vector<48x80xbf16>
    %4 = vector.extract_strided_slice %1 {offsets = [0, 2], sizes = [48, 80], strides = [1, 1]} : vector<48x110xbf16> to vector<48x80xbf16>
    %5 = vector.extract_strided_slice %1 {offsets = [0, 10], sizes = [48, 80], strides = [1, 1]} : vector<48x110xbf16> to vector<48x80xbf16>
    %6 = vector.extract_strided_slice %1 {offsets = [0, 11], sizes = [48, 80], strides = [1, 1]} : vector<48x110xbf16> to vector<48x80xbf16>
    %7 = vector.extract_strided_slice %1 {offsets = [0, 12], sizes = [48, 80], strides = [1, 1]} : vector<48x110xbf16> to vector<48x80xbf16>
    %8 = vector.extract_strided_slice %1 {offsets = [0, 20], sizes = [48, 80], strides = [1, 1]} : vector<48x110xbf16> to vector<48x80xbf16>
    %9 = vector.extract_strided_slice %1 {offsets = [0, 21], sizes = [48, 80], strides = [1, 1]} : vector<48x110xbf16> to vector<48x80xbf16>
    %10 = vector.extract_strided_slice %1 {offsets = [0, 22], sizes = [48, 80], strides = [1, 1]} : vector<48x110xbf16> to vector<48x80xbf16>
    %11 = tpu.concatenate %2, %3, %4, %5, %6, %7, %8, %9, %10 in 0 : vector<48x80xbf16>, vector<48x80xbf16>, vector<48x80xbf16>, vector<48x80xbf16>, vector<48x80xbf16>, vector<48x80xbf16>, vector<48x80xbf16>, vector<48x80xbf16>, vector<48x80xbf16> -> vector<432x80xbf16>
    %c0_3 = arith.constant 0 : index
    %c0_4 = arith.constant 0 : index
    %12 = vector.load %arg3[%c0_3, %c0_4] : memref<48x432xbf16, #tpu.memory_space<vmem>>, vector<48x432xbf16>
    %cst = arith.constant dense<0.000000e+00> : vector<48x80xf32>
    %13 = tpu.matmul %12, %11, %cst {dimension_numbers = #tpu.dot_dimension_numbers<[1], [0], [0], [1], [0, 0, 1, 1], [], []>} : vector<48x432xbf16>, vector<432x80xbf16>, vector<48x80xf32> -> vector<48x80xf32>
    %c0_5 = arith.constant 0 : index
    %c0_6 = arith.constant 0 : index
    %14 = vector.load %arg4[%c0_5, %c0_6] : memref<48x1xf32, #tpu.memory_space<vmem>>, vector<48x1xf32>
    %15 = vector.broadcast %14 : vector<48x1xf32> to vector<48x80xf32>
    %16 = arith.addf %13, %15 : vector<48x80xf32>
    %cst_7 = arith.constant 0.000000e+00 : f32
    %17 = vector.broadcast %cst_7 : f32 to vector<48x80xf32>
    %18 = arith.maximumf %16, %17 : vector<48x80xf32>
    %19 = arith.truncf %18 : vector<48x80xf32> to vector<48x80xbf16>
    %c0_8 = arith.constant 0 : index
    %c0_9 = arith.constant 0 : index
    %c0_10 = arith.constant 0 : index
    %c0_11 = arith.constant 0 : index
    %20 = vector.load %arg5[%c0_8, %c0_9, %c0_10, %c0_11] : memref<1x1x48x80xbf16, #tpu.memory_space<vmem>>, vector<1x1x48x80xbf16>
    %21 = vector.shape_cast %20 : vector<1x1x48x80xbf16> to vector<48x80xbf16>
    %22 = vector.shape_cast %19 : vector<48x80xbf16> to vector<1x1x48x80xbf16>
    tpu.vector_store %arg5[%c0_8, %c0_9, %c0_10, %c0_11], %22 {strides = array<i32>} : memref<1x1x48x80xbf16, #tpu.memory_space<vmem>>, vector<1x1x48x80xbf16>,
    return
  }
  func.func @transform_0(%arg0: i32, %arg1: i32) -> (i32, i32, i32, i32) {
    %c0_i32 = arith.constant 0 : i32
    %c0_i32_0 = arith.constant 0 : i32
    %c0_i32_1 = arith.constant 0 : i32
    return %arg0, %arg1, %c0_i32, %c0_i32_0 : i32, i32, i32, i32
  }
  func.func @transform_1(%arg0: i32, %arg1: i32) -> (i32, i32) {
    %c0_i32 = arith.constant 0 : i32
    %c0_i32_0 = arith.constant 0 : i32
    %c0_i32_1 = arith.constant 0 : i32
    return %c0_i32, %c0_i32_0 : i32, i32
  }
  func.func @transform_2(%arg0: i32, %arg1: i32) -> (i32, i32) {
    %c0_i32 = arith.constant 0 : i32
    %c0_i32_0 = arith.constant 0 : i32
    %c0_i32_1 = arith.constant 0 : i32
    return %c0_i32, %c0_i32_0 : i32, i32
  }
  func.func @transform_3(%arg0: i32, %arg1: i32) -> (i32, i32, i32, i32) {
    %c0_i32 = arith.constant 0 : i32
    %c0_i32_0 = arith.constant 0 : i32
    %c0_i32_1 = arith.constant 0 : i32
    return %arg0, %arg1, %c0_i32, %c0_i32_0 : i32, i32, i32, i32
  }
}

module attributes {stable_mosaic.version = 11 : i64} {
  func.func @conv3x3_tap_kernel(%arg0: i32, %arg1: i32, %arg2: memref<1x1x48x72xbf16, #tpu.memory_space<vmem>>, %arg3: memref<16x432xbf16, #tpu.memory_space<vmem>>, %arg4: memref<16x1xf32, #tpu.memory_space<vmem>>, %arg5: memref<1x1x16x48xf32, #tpu.memory_space<vmem>>) attributes {dimension_semantics = [#tpu.dimension_semantics<parallel>, #tpu.dimension_semantics<parallel>], iteration_bounds = array<i64: 2, 1>, scalar_prefetch = 0 : i64, scratch_operands = 0 : i64, tpu.core_type = #tpu.core_type<tc>, window_params = [{transform_indices = @transform_0, window_bounds = array<i64: 1, 1, 48, 72>}, {pipeline_mode = #tpu.pipeline_mode<synchronous>, transform_indices = @transform_1, window_bounds = array<i64: 16, 432>}, {pipeline_mode = #tpu.pipeline_mode<synchronous>, transform_indices = @transform_2, window_bounds = array<i64: 16, 1>}, {transform_indices = @transform_3, window_bounds = array<i64: 1, 1, 16, 48>}]} {
    %c0 = arith.constant 0 : index
    %c0_0 = arith.constant 0 : index
    %c0_1 = arith.constant 0 : index
    %c0_2 = arith.constant 0 : index
    %0 = vector.load %arg2[%c0, %c0_0, %c0_1, %c0_2] : memref<1x1x48x72xbf16, #tpu.memory_space<vmem>>, vector<1x1x48x72xbf16>
    %1 = vector.shape_cast %0 : vector<1x1x48x72xbf16> to vector<48x72xbf16>
    %2 = vector.extract_strided_slice %1 {offsets = [0, 0], sizes = [48, 48], strides = [1, 1]} : vector<48x72xbf16> to vector<48x48xbf16>
    %3 = vector.extract_strided_slice %1 {offsets = [0, 1], sizes = [48, 48], strides = [1, 1]} : vector<48x72xbf16> to vector<48x48xbf16>
    %4 = vector.extract_strided_slice %1 {offsets = [0, 2], sizes = [48, 48], strides = [1, 1]} : vector<48x72xbf16> to vector<48x48xbf16>
    %5 = vector.extract_strided_slice %1 {offsets = [0, 8], sizes = [48, 48], strides = [1, 1]} : vector<48x72xbf16> to vector<48x48xbf16>
    %6 = vector.extract_strided_slice %1 {offsets = [0, 9], sizes = [48, 48], strides = [1, 1]} : vector<48x72xbf16> to vector<48x48xbf16>
    %7 = vector.extract_strided_slice %1 {offsets = [0, 10], sizes = [48, 48], strides = [1, 1]} : vector<48x72xbf16> to vector<48x48xbf16>
    %8 = vector.extract_strided_slice %1 {offsets = [0, 16], sizes = [48, 48], strides = [1, 1]} : vector<48x72xbf16> to vector<48x48xbf16>
    %9 = vector.extract_strided_slice %1 {offsets = [0, 17], sizes = [48, 48], strides = [1, 1]} : vector<48x72xbf16> to vector<48x48xbf16>
    %10 = vector.extract_strided_slice %1 {offsets = [0, 18], sizes = [48, 48], strides = [1, 1]} : vector<48x72xbf16> to vector<48x48xbf16>
    %11 = tpu.concatenate %2, %3, %4, %5, %6, %7, %8, %9, %10 in 0 : vector<48x48xbf16>, vector<48x48xbf16>, vector<48x48xbf16>, vector<48x48xbf16>, vector<48x48xbf16>, vector<48x48xbf16>, vector<48x48xbf16>, vector<48x48xbf16>, vector<48x48xbf16> -> vector<432x48xbf16>
    %c0_3 = arith.constant 0 : index
    %c0_4 = arith.constant 0 : index
    %12 = vector.load %arg3[%c0_3, %c0_4] : memref<16x432xbf16, #tpu.memory_space<vmem>>, vector<16x432xbf16>
    %cst = arith.constant dense<0.000000e+00> : vector<16x48xf32>
    %13 = tpu.matmul %12, %11, %cst {dimension_numbers = #tpu.dot_dimension_numbers<[1], [0], [0], [1], [0, 0, 1, 1], [], []>} : vector<16x432xbf16>, vector<432x48xbf16>, vector<16x48xf32> -> vector<16x48xf32>
    %c0_5 = arith.constant 0 : index
    %c0_6 = arith.constant 0 : index
    %14 = vector.load %arg4[%c0_5, %c0_6] : memref<16x1xf32, #tpu.memory_space<vmem>>, vector<16x1xf32>
    %15 = vector.broadcast %14 : vector<16x1xf32> to vector<16x48xf32>
    %16 = arith.addf %13, %15 : vector<16x48xf32>
    %c0_7 = arith.constant 0 : index
    %c0_8 = arith.constant 0 : index
    %c0_9 = arith.constant 0 : index
    %c0_10 = arith.constant 0 : index
    %17 = vector.load %arg5[%c0_7, %c0_8, %c0_9, %c0_10] : memref<1x1x16x48xf32, #tpu.memory_space<vmem>>, vector<1x1x16x48xf32>
    %18 = vector.shape_cast %17 : vector<1x1x16x48xf32> to vector<16x48xf32>
    %19 = vector.shape_cast %16 : vector<16x48xf32> to vector<1x1x16x48xf32>
    tpu.vector_store %arg5[%c0_7, %c0_8, %c0_9, %c0_10], %19 {strides = array<i32>} : memref<1x1x16x48xf32, #tpu.memory_space<vmem>>, vector<1x1x16x48xf32>,
    return
  }
  func.func @transform_0(%arg0: i32, %arg1: i32) -> (i32, i32, i32, i32) {
    %c0_i32 = arith.constant 0 : i32
    %c0_i32_0 = arith.constant 0 : i32
    %c0_i32_1 = arith.constant 0 : i32
    return %arg0, %arg1, %c0_i32, %c0_i32_0 : i32, i32, i32, i32
  }
  func.func @transform_1(%arg0: i32, %arg1: i32) -> (i32, i32) {
    %c0_i32 = arith.constant 0 : i32
    %c0_i32_0 = arith.constant 0 : i32
    %c0_i32_1 = arith.constant 0 : i32
    return %c0_i32, %c0_i32_0 : i32, i32
  }
  func.func @transform_2(%arg0: i32, %arg1: i32) -> (i32, i32) {
    %c0_i32 = arith.constant 0 : i32
    %c0_i32_0 = arith.constant 0 : i32
    %c0_i32_1 = arith.constant 0 : i32
    return %c0_i32, %c0_i32_0 : i32, i32
  }
  func.func @transform_3(%arg0: i32, %arg1: i32) -> (i32, i32, i32, i32) {
    %c0_i32 = arith.constant 0 : i32
    %c0_i32_0 = arith.constant 0 : i32
    %c0_i32_1 = arith.constant 0 : i32
    return %arg0, %arg1, %c0_i32, %c0_i32_0 : i32, i32, i32, i32
  }
}

</mosaic_0001>

<llo_original>
// kernel: a_call__.5
$region0: #{a_call__.5}
  #allocation0 [shape = 'u32[]', space=smem, size = 0x4, offset = 0x4, fixed_abs, tag = 'smem constant byte address 0x4 - core index']
  #allocation1 [shape = 'u32[144,128]{1,0:T(1,128)}', space=vmem, size = 0x12000, scoped, tag = 'internal scratch']
  %s0 = inlined_call_operand.vmem [shape: bf16[32,128], index: 0, kind: input, shape index: {}]
  %s1 = inlined_call_operand.vmem [shape: bf16[16,32], index: 1, kind: input, shape index: {}]
  %s2 = inlined_call_operand.vmem [shape: f32[16,1], index: 2, kind: input, shape index: {}]
  %s3 = inlined_call_operand.vmem [shape: bf16[16,16], index: 3, kind: input, shape index: {}]
  %s4 = inlined_call_operand.vmem [shape: f32[16,1], index: 4, kind: input, shape index: {}]
  %s5 = inlined_call_operand.vmem [shape: bf16[16,128], index: 5, kind: output, shape index: {}]
  %s6 = sld [smem:[#allocation0]]
  $region30: #{a_call__.5} parent=0
    _
  %s8 = ssub.s32 1, %s6
  %s9 = scalar_select 0, %s8, %s6
  // Predicated region
  $region2: #{a_call__.5} parent=0 // pred_check
    _
  $region3: #{a_call__.5} parent=0 // pred_check_branch
    %11 = sbr.rel (0) target = $region5
  $region4: #{a_call__.5} parent=0 // pred_region
    _
  $region5: #{a_call__.5} parent=0 // pred_fallthru
    _
  // Predicated region
  $region6: #{a_call__.5} parent=0 // pred_check
    _
  $region7: #{a_call__.5} parent=0 // pred_check_branch
    %13 = sbr.rel (0) target = $region9
  $region8: #{a_call__.5} parent=0 // pred_region
    _
  $region9: #{a_call__.5} parent=0 // pred_fallthru
    _
  // Predicated region
  $region10: #{a_call__.5} parent=0 // pred_check
    _
  $region11: #{a_call__.5} parent=0 // pred_check_branch
    %15 = sbr.rel (0) target = $region13
  $region12: #{a_call__.5} parent=0 // pred_region
    _
  $region13: #{a_call__.5} parent=0 // pred_fallthru
    _
  // Predicated region
  $region14: #{a_call__.5} parent=0 // pred_check
    _
  $region15: #{a_call__.5} parent=0 // pred_check_branch
    %17 = sbr.rel (0) target = $region17
  $region16: #{a_call__.5} parent=0 // pred_region
    _
  $region17: #{a_call__.5} parent=0 // pred_fallthru
    _
  // Predicated region
  $region18: #{a_call__.5} parent=0 // pred_check
    _
  $region19: #{a_call__.5} parent=0 // pred_check_branch
    %19 = sbr.rel (0) target = $region21
  $region20: #{a_call__.5} parent=0 // pred_region
    _
  $region21: #{a_call__.5} parent=0 // pred_fallthru
    _
  %v21 = vld [vmem:[%s1] sm:$0xf]
  %v22 = vld [vmem:[%s1 + $0x4] sm:$0xf]
  %v23 = vld [vmem:[%s0] sm:$0xf]
  %v24 = vld [vmem:[%s0 + $0x4] sm:$0xf]
  %v25 = vld [vmem:[%s0 + $0x8] sm:$0xf]
  %v26 = vld [vmem:[%s0 + $0xc] sm:$0xf]
  %v27 = vld [vmem:[%s2] sm:$0xff]
  %v28 = vld [vmem:[%s2 + $0x8] sm:$0xff]
  %30 = vset.pattern.permute.xlu0 0
  %31 = vperm.xlu0 %30, %v27
  %v32 = vpop.permute.xlu0 %31
  %35 = vset.pattern.permute.xlu0 0
  %36 = vperm.xlu0 %35, %v28
  %v37 = vpop.permute.xlu0 %36
  %v41 = vunpack.c.l.b16 %v21
  %v42 = vunpack.c.l.b16 %v22
  %v43 = vpack.c.b16 %v42, %v41
  %v48 = vunpack.c.l.b16 %v23
  %v49 = vunpack.c.l.b16 %v24
  %v50 = vunpack.c.l.b16 %v25
  %v51 = vunpack.c.l.b16 %v26
  %v52 = vpack.c.b16 %v49, %v48
  %v53 = vpack.c.b16 %v51, %v50
  %vm56 = vcmask 261120
  %v58 = vsel %vm56, %v43, 0
  %60 = vmatprep.subr.bf16.mxu0 0
  %61 = vmatpush1.bf16.msra.mxu0 %v52
  %62 = vmatprep.subr.bf16.mxu0 0
  %63 = vmatpush1.bf16.msra.mxu0 %v53
  %64 = vmatprep.subr.bf16.mxu0 0
  %65 = vmatpush1.bf16.msra.mxu0 0
  %66 = vmatprep.subr.bf16.mxu0 0
  %67 = vmatpush1.bf16.msra.mxu0 0
  %68 = vmatprep.subr.bf16.mxu0 0
  %69 = vmatpush1.bf16.msra.mxu0 0
  %70 = vmatprep.subr.bf16.mxu0 0
  %71 = vmatpush1.bf16.msra.mxu0 0
  %72 = vmatprep.subr.bf16.mxu0 0
  %73 = vmatpush1.bf16.msra.mxu0 0
  %74 = vmatprep.subr.bf16.mxu0 0
  %75 = vmatpush1.bf16.msra.mxu0 0
  %76 = vmatprep.subr.bf16.mxu0 0
  %77 = vmatpush1.bf16.msra.mxu0 0
  %78 = vmatprep.subr.bf16.mxu0 0
  %79 = vmatpush1.bf16.msra.mxu0 0
  %80 = vmatprep.subr.bf16.mxu0 0
  %81 = vmatpush1.bf16.msra.mxu0 0
  %82 = vmatprep.subr.bf16.mxu0 0
  %83 = vmatpush1.bf16.msra.mxu0 0
  %84 = vmatprep.subr.bf16.mxu0 0
  %85 = vmatpush1.bf16.msra.mxu0 0
  %86 = vmatprep.subr.bf16.mxu0 0
  %87 = vmatpush1.bf16.msra.mxu0 0
  %88 = vmatprep.subr.bf16.mxu0 0
  %89 = vmatpush1.bf16.msra.mxu0 0
  %90 = vmatprep.subr.bf16.mxu0 0
  %91 = vmatpush1.bf16.msra.mxu0 0
  %92 = vmatprep.mubr.bf16.mxu0 0
  %93 = vmatmul.mubr.bf16.gmra.mrb[0].mxu0 %v58
  %v94 = vpop.f32.mrb[0].mxu0
  %v95 = vadd.f32 %v32, %v94
  %v96 = vpop.f32.mrb[0].mxu0
  %v97 = vpop.f32.mrb[0].mxu0
  %v98 = vadd.f32 %v37, %v97
  %v99 = vpop.f32.mrb[0].mxu0
  %100 = vdwg.mxu0
  %v101 = vmax.f32 %v95, 0.0
  %v102 = vmax.f32 %v98, 0.0
  %v103 = vpack.c.bf16 %v102, %v101
  %v104 = vld [vmem:[%s3] sm:$0xf]
  %v105 = vld [vmem:[%s3 + $0x4] sm:$0xf]
  %v106 = vld [vmem:[%s4] sm:$0xff]
  %v107 = vld [vmem:[%s4 + $0x8] sm:$0xff]
  %109 = vset.pattern.permute.xlu0 0
  %110 = vperm.xlu0 %109, %v106
  %v111 = vpop.permute.xlu0 %110
  %114 = vset.pattern.permute.xlu0 0
  %115 = vperm.xlu0 %114, %v107
  %v116 = vpop.permute.xlu0 %115
  %v120 = vunpack.c.l.b16 %v104
  %v121 = vunpack.c.l.b16 %v105
  %v122 = vpack.c.b16 %v121, %v120
  %vm123 = vcmask 130048
  %v125 = vsel %vm123, %v122, 0
  %127 = vmatprep.subr.bf16.mxu0 0
  %128 = vmatpush1.bf16.msra.mxu0 %v103
  %129 = vmatprep.subr.bf16.mxu0 0
  %130 = vmatpush1.bf16.msra.mxu0 0
  %131 = vmatprep.subr.bf16.mxu0 0
  %132 = vmatpush1.bf16.msra.mxu0 0
  %133 = vmatprep.subr.bf16.mxu0 0
  %134 = vmatpush1.bf16.msra.mxu0 0
  %135 = vmatprep.subr.bf16.mxu0 0
  %136 = vmatpush1.bf16.msra.mxu0 0
  %137 = vmatprep.subr.bf16.mxu0 0
  %138 = vmatpush1.bf16.msra.mxu0 0
  %139 = vmatprep.subr.bf16.mxu0 0
  %140 = vmatpush1.bf16.msra.mxu0 0
  %141 = vmatprep.subr.bf16.mxu0 0
  %142 = vmatpush1.bf16.msra.mxu0 0
  %143 = vmatprep.subr.bf16.mxu0 0
  %144 = vmatpush1.bf16.msra.mxu0 0
  %145 = vmatprep.subr.bf16.mxu0 0
  %146 = vmatpush1.bf16.msra.mxu0 0
  %147 = vmatprep.subr.bf16.mxu0 0
  %148 = vmatpush1.bf16.msra.mxu0 0
  %149 = vmatprep.subr.bf16.mxu0 0
  %150 = vmatpush1.bf16.msra.mxu0 0
  %151 = vmatprep.subr.bf16.mxu0 0
  %152 = vmatpush1.bf16.msra.mxu0 0
  %153 = vmatprep.subr.bf16.mxu0 0
  %154 = vmatpush1.bf16.msra.mxu0 0
  %155 = vmatprep.subr.bf16.mxu0 0
  %156 = vmatpush1.bf16.msra.mxu0 0
  %157 = vmatprep.subr.bf16.mxu0 0
  %158 = vmatpush1.bf16.msra.mxu0 0
  %159 = vmatprep.mubr.bf16.mxu0 0
  %160 = vmatmul.mubr.bf16.gmra.mrb[0].mxu0 %v125
  %v161 = vpop.f32.mrb[0].mxu0
  %v162 = vadd.f32 %v111, %v161
  %v163 = vpop.f32.mrb[0].mxu0
  %v164 = vpop.f32.mrb[0].mxu0
  %v165 = vadd.f32 %v116, %v164
  %v166 = vpop.f32.mrb[0].mxu0
  %167 = vdwg.mxu0
  %v168 = vpack.c.bf16 %v165, %v162
  %v170 = vunpack.c.l.b16 %v168
  %v171 = vunpack.c.h.b16 %v168
  %v172 = vpack.c.b16 %v170, %v170
  %v173 = vpack.c.b16 %v171, %v171
  %176 = vst [vmem:[%s5] sm:$0xf] %v172
  %177 = vst [vmem:[%s5 + $0x4] sm:$0xf] %v173
  // Predicated region
  $region22: #{a_call__.5} parent=0 // pred_check
    _
  $region23: #{a_call__.5} parent=0 // pred_check_branch
    %179 = sbr.rel (0) target = $region25
  $region24: #{a_call__.5} parent=0 // pred_region
    _
  $region25: #{a_call__.5} parent=0 // pred_fallthru
    _
  // Predicated region
  $region26: #{a_call__.5} parent=0 // pred_check
    _
  $region27: #{a_call__.5} parent=0 // pred_check_branch
    %181 = sbr.rel (0) target = $region29
  $region28: #{a_call__.5} parent=0 // pred_region
    _
  $region29: #{a_call__.5} parent=0 // pred_fallthru
    _

// kernel: a_call__.8
$region0: #{a_call__.8}
  #allocation0 [shape = 'u32[]', space=smem, size = 0x4, offset = 0x4, fixed_abs, tag = 'smem constant byte address 0x4 - core index']
  #allocation1 [shape = 'u32[144,128]{1,0:T(1,128)}', space=vmem, size = 0x12000, scoped, tag = 'internal scratch']
  %s0 = inlined_call_operand.vmem [shape: bf16[2,1,48,110], index: 0, kind: input, shape index: {}]
  %s1 = inlined_call_operand.vmem [shape: bf16[48,432], index: 1, kind: input, shape index: {}]
  %s2 = inlined_call_operand.vmem [shape: f32[48,1], index: 2, kind: input, shape index: {}]
  %s3 = inlined_call_operand.vmem [shape: bf16[2,1,48,80], index: 3, kind: output, shape index: {}]
  %s4 = sld [smem:[#allocation0]]
  $region45: #{a_call__.8} parent=0
    _
  %s6 = ssub.s32 1, %s4
  %s7 = scalar_select 0, %s6, %s4
  loop: start=0, step=1, limit=4
  $region2: #{a_call__.8} parent=0 // loop_pre_header
    _
  $region3: #{a_call__.8} parent=0 // loop_header
    %s9 = sphi 0, %s13
    %p10 = scmp.ge.s32.totalorder %s9, 4
    %s16 = sphi 0, %s28
    %s17 = sphi 0, %s24
    %s18 = sphi 0, %s16
    %s19 = sphi 0, %s17
    %s20 = sphi 0, %s18
    %s21 = sphi 0, %s19
    %s33 = sphi 0, %s35
    %s36 = sphi 0, %s33
    %s37 = sphi 0, %s36
    %s53 = sphi 0, %s37
    %s57 = sphi 0, %s57
    %s59 = sphi 0, %s57
    %s60 = sphi 0, %s59
    %s74 = sphi 0, %s60
    %s78 = sphi 0, %s78
    %s80 = sphi 0, %s78
    %s81 = sphi 0, %s80
    %s95 = sphi 0, %s81
    %s103 = sphi 0, %s105
    %s106 = sphi 0, %s103
    %s107 = sphi 0, %s106
    %s123 = sphi 0, %s107
  $region4: #{a_call__.8} parent=0 // loop_header_branch
    %12 = sbr.rel (%p10) target = $region8
  $region5: #{a_call__.8} parent=0 // loop_body
    %s14 = ssub.s32 %s9, 1
    %s15 = ssub.s32 %s9, 2
    %s22 = sadd.s32 1, %s17
    %p23 = scmp.ge.s32.totalorder %s22, 1
    %s24 = scalar_select %p23, 0, %s22
    %s25 = sadd.s32 1, %s16
    %s26 = scalar_select %p23, %s25, %s16
    %p27 = scmp.ge.s32.totalorder %s26, 2
    %s28 = scalar_select %p27, 0, %s26
    %s29 = ssub.s32 %s16, %s28
    %s30 = ssub.s32 %s17, %s24
    %s31 = sor.u32 %s29, %s30
    %p32 = scmp.eq.s32.totalorder %s31, 0
    %s34 = sadd.s32 %s33, 1
    %s35 = scalar_select %p32, %s33, %s34
    %p38 = pneg %p32
    %p39 = scmp.eq.s32.totalorder %s9, 1
    %p40 = por %p38, %p39
    %p41 = scmp.ne.s32.totalorder %s33, %s36
    %p42 = scmp.eq.s32.totalorder %s9, 0
    %p43 = por %p41, %p42
    %p44 = scmp.ne.s32.totalorder %s33, %s36
    %p45 = scmp.eq.s32.totalorder %s14, 1
    %p46 = por %p44, %p45
    %p47 = scmp.ne.s32.totalorder %s36, %s37
    %p48 = scmp.eq.s32.totalorder %s14, 0
    %p49 = por %p47, %p48
    %p50 = scmp.ne.s32.totalorder %s36, %s37
    %p51 = scmp.eq.s32.totalorder %s15, 1
    %p52 = por %p50, %p51
    %p54 = scmp.ne.s32.totalorder %s37, %s53
    %p55 = scmp.eq.s32.totalorder %s15, 0
    %p56 = por %p54, %p55
    %s58 = sadd.s32 %s57, 1
    %p61 = scmp.eq.s32.totalorder %s9, 1
    %p62 = scmp.ne.s32.totalorder %s57, %s59
    %p63 = scmp.eq.s32.totalorder %s9, 0
    %p64 = por %p62, %p63
    %p65 = scmp.ne.s32.totalorder %s57, %s59
    %p66 = scmp.eq.s32.totalorder %s14, 1
    %p67 = por %p65, %p66
    %p68 = scmp.ne.s32.totalorder %s59, %s60
    %p69 = scmp.eq.s32.totalorder %s14, 0
    %p70 = por %p68, %p69
    %p71 = scmp.ne.s32.totalorder %s59, %s60
    %p72 = scmp.eq.s32.totalorder %s15, 1
    %p73 = por %p71, %p72
    %p75 = scmp.ne.s32.totalorder %s60, %s74
    %p76 = scmp.eq.s32.totalorder %s15, 0
    %p77 = por %p75, %p76
    %s79 = sadd.s32 %s78, 1
    %p82 = scmp.eq.s32.totalorder %s9, 1
    %p83 = scmp.ne.s32.totalorder %s78, %s80
    %p84 = scmp.eq.s32.totalorder %s9, 0
    %p85 = por %p83, %p84
    %p86 = scmp.ne.s32.totalorder %s78, %s80
    %p87 = scmp.eq.s32.totalorder %s14, 1
    %p88 = por %p86, %p87
    %p89 = scmp.ne.s32.totalorder %s80, %s81
    %p90 = scmp.eq.s32.totalorder %s14, 0
    %p91 = por %p89, %p90
    %p92 = scmp.ne.s32.totalorder %s80, %s81
    %p93 = scmp.eq.s32.totalorder %s15, 1
    %p94 = por %p92, %p93
    %p96 = scmp.ne.s32.totalorder %s81, %s95
    %p97 = scmp.eq.s32.totalorder %s15, 0
    %p98 = por %p96, %p97
    %s99 = ssub.s32 %s16, %s28
    %s100 = ssub.s32 %s17, %s24
    %s101 = sor.u32 %s99, %s100
    %p102 = scmp.eq.s32.totalorder %s101, 0
    %s104 = sadd.s32 %s103, 1
    %s105 = scalar_select %p102, %s103, %s104
    %p108 = pneg %p102
    %p109 = scmp.eq.s32.totalorder %s9, 1
    %p110 = por %p108, %p109
    %p111 = scmp.ne.s32.totalorder %s103, %s106
    %p112 = scmp.eq.s32.totalorder %s9, 0
    %p113 = por %p111, %p112
    %p114 = scmp.ne.s32.totalorder %s103, %s106
    %p115 = scmp.eq.s32.totalorder %s14, 1
    %p116 = por %p114, %p115
    %p117 = scmp.ne.s32.totalorder %s106, %s107
    %p118 = scmp.eq.s32.totalorder %s14, 0
    %p119 = por %p117, %p118
    %p120 = scmp.ne.s32.totalorder %s106, %s107
    %p121 = scmp.eq.s32.totalorder %s15, 1
    %p122 = por %p120, %p121
    %p124 = scmp.ne.s32.totalorder %s107, %s123
    %p125 = scmp.eq.s32.totalorder %s15, 0
    %p126 = por %p124, %p125
    %p127 = scmp.le.s32.totalorder 1, %s9
    %p128 = scmp.lt.s32.totalorder %s9, 3
    %p129 = pnand %p127, %p128
    %p130 = pneg %p129
    // Predicated region
    $region9: #{a_call__.8} parent=5 // pred_check
      _
    $region10: #{a_call__.8} parent=5 // pred_check_branch
      %132 = sbr.rel (%p129) target = $region12
    $region11: #{a_call__.8} parent=5 // pred_region
      %s133 = ssub.s32 %s9, 1
      // Predicated region
      $region13: #{a_call__.8} parent=11 // pred_check
        %p134 = pneg %p70
      $region14: #{a_call__.8} parent=11 // pred_check_branch
        %136 = sbr.rel (%p134) target = $region16
      $region15: #{a_call__.8} parent=11 // pred_region
        _
      $region16: #{a_call__.8} parent=11 // pred_fallthru
        _
      // Predicated region
      $region17: #{a_call__.8} parent=11 // pred_check
        %p137 = pneg %p91
      $region18: #{a_call__.8} parent=11 // pred_check_branch
        %139 = sbr.rel (%p137) target = $region20
      $region19: #{a_call__.8} parent=11 // pred_region
        _
      $region20: #{a_call__.8} parent=11 // pred_fallthru
        _
    $region12: #{a_call__.8} parent=5 // pred_fallthru
      _
    %p140 = scmp.lt.s32.totalorder %s9, 2
    // Predicated region
    $region21: #{a_call__.8} parent=5 // pred_check
      %p141 = pneg %p140
    $region22: #{a_call__.8} parent=5 // pred_check_branch
      %143 = sbr.rel (%p141) target = $region24
    $region23: #{a_call__.8} parent=5 // pred_region
      // Predicated region
      $region25: #{a_call__.8} parent=23 // pred_check
        %p144 = pneg %p43
      $region26: #{a_call__.8} parent=23 // pred_check_branch
        %146 = sbr.rel (%p144) target = $region28
      $region27: #{a_call__.8} parent=23 // pred_region
        %p147 = scmp.lt.s32.totalorder %s16, 1
        %s148 = scalar_select %p147, %s16, 1
        %p149 = scmp.lt.s32.totalorder %s17, 0
        %s150 = scalar_select %p149, %s17, 0
        %s151 = smul.addr %s150, 6
        %s152 = smul.addr %s148, 6
        %s153 = sadd.s32 %s151, %s152
        %s154 = smul.addr %s153, 4
        %s155 = scalar_lea.vmem %s0, %s154
      $region28: #{a_call__.8} parent=23 // pred_fallthru
        _
    $region24: #{a_call__.8} parent=5 // pred_fallthru
      _
    %p156 = scmp.le.s32.totalorder 1, %s9
    %p157 = scmp.lt.s32.totalorder %s9, 3
    %p158 = pnand %p156, %p157
    %p159 = pneg %p158
    // Predicated region
    $region29: #{a_call__.8} parent=5 // pred_check
      _
    $region30: #{a_call__.8} parent=5 // pred_check_branch
      %161 = sbr.rel (%p158) target = $region32
    $region31: #{a_call__.8} parent=5 // pred_region
      %s162 = ssub.s32 %s9, 1
      %p163 = scmp.lt.s32.totalorder %s18, 1
      %s164 = scalar_select %p163, %s18, 1
      %p165 = scmp.lt.s32.totalorder %s19, 0
      %s166 = scalar_select %p165, %s19, 0
      %s167 = smul.addr %s166, 6
      %s168 = smul.addr %s164, 6
      %s169 = sadd.s32 %s167, %s168
      %s170 = smul.addr %s169, 4
      %s171 = scalar_lea.vmem %s0, %s170
      %p172 = pneg %p49
      %p173 = pneg %p46
      %p174 = pneg %p70
      %p175 = pneg %p67
      %p176 = pneg %p91
      %p177 = pneg %p88
      %p178 = pneg %p119
      %p179 = pneg %p116
      %p180 = scmp.lt.s32.totalorder %s18, 1
      %s181 = scalar_select %p180, %s18, 1
      %p182 = scmp.lt.s32.totalorder %s19, 0
      %s183 = scalar_select %p182, %s19, 0
      %s184 = smul.addr %s183, 6
      %s185 = smul.addr %s181, 6
      %s186 = sadd.s32 %s184, %s185
      %s187 = smul.addr %s186, 4
      %s188 = scalar_lea.vmem %s3, %s187
      %p189 = scmp.lt.s32.totalorder %s18, 1
      %s190 = scalar_select %p189, %s18, 1
      %p191 = scmp.lt.s32.totalorder %s19, 0
      %s192 = scalar_select %p191, %s19, 0
      %s193 = smul.addr %s192, 6
      %s194 = smul.addr %s190, 6
      %s195 = sadd.s32 %s193, %s194
      %s196 = smul.addr %s195, 4
      %s197 = scalar_lea.vmem %s0, %s196
      %p198 = scmp.lt.s32.totalorder %s18, 1
      %s199 = scalar_select %p198, %s18, 1
      %p200 = scmp.lt.s32.totalorder %s19, 0
      %s201 = scalar_select %p200, %s19, 0
      %s202 = smul.addr %s201, 6
      %s203 = smul.addr %s199, 6
      %s204 = sadd.s32 %s202, %s203
      %s205 = smul.addr %s204, 4
      %s206 = scalar_lea.vmem %s3, %s205
      %v208 = vld [vmem:[%s197] sm:$0xf]
      %v209 = vld [vmem:[%s197 + $0x4] sm:$0xf]
      %v210 = vld [vmem:[%s197 + $0x8] sm:$0xf]
      %v211 = vld [vmem:[%s197 + $0xc] sm:$0xf]
      %v212 = vld [vmem:[%s197 + $0x10] sm:$0xf]
      %v213 = vld [vmem:[%s197 + $0x14] sm:$0xf]
      %v220 = vunpack.c.l.b16 %v208
      %v221 = vunpack.c.l.b16 %v209
      %v222 = vunpack.c.l.b16 %v210
      %v223 = vunpack.c.l.b16 %v211
      %v224 = vunpack.c.l.b16 %v212
      %v225 = vunpack.c.l.b16 %v213
      %v226 = vpack.c.b16 %v221, %v220
      %v227 = vpack.c.b16 %v223, %v222
      %v228 = vpack.c.b16 %v225, %v224
      %232 = vrot.lane.b32.xlu0 %v226, 127
      %v233 = vpop.permute.xlu0 %232
      %234 = vrot.lane.b32.xlu0 %v227, 127
      %v235 = vpop.permute.xlu0 %234
      %236 = vrot.lane.b32.xlu0 %v228, 127
      %v237 = vpop.permute.xlu0 %236
      %241 = vrot.lane.b32.xlu0 %v226, 126
      %v242 = vpop.permute.xlu0 %241
      %243 = vrot.lane.b32.xlu0 %v227, 126
      %v244 = vpop.permute.xlu0 %243
      %245 = vrot.lane.b32.xlu0 %v228, 126
      %v246 = vpop.permute.xlu0 %245
      %250 = vrot.lane.b32.xlu0 %v226, 118
      %v251 = vpop.permute.xlu0 %250
      %252 = vrot.lane.b32.xlu0 %v227, 118
      %v253 = vpop.permute.xlu0 %252
      %254 = vrot.lane.b32.xlu0 %v228, 118
      %v255 = vpop.permute.xlu0 %254
      %259 = vrot.lane.b32.xlu0 %v226, 117
      %v260 = vpop.permute.xlu0 %259
      %261 = vrot.lane.b32.xlu0 %v227, 117
      %v262 = vpop.permute.xlu0 %261
      %263 = vrot.lane.b32.xlu0 %v228, 117
      %v264 = vpop.permute.xlu0 %263
      %268 = vrot.lane.b32.xlu0 %v226, 116
      %v269 = vpop.permute.xlu0 %268
      %270 = vrot.lane.b32.xlu0 %v227, 116
      %v271 = vpop.permute.xlu0 %270
      %272 = vrot.lane.b32.xlu0 %v228, 116
      %v273 = vpop.permute.xlu0 %272
      %277 = vrot.lane.b32.xlu0 %v226, 108
      %v278 = vpop.permute.xlu0 %277
      %279 = vrot.lane.b32.xlu0 %v227, 108
      %v280 = vpop.permute.xlu0 %279
      %281 = vrot.lane.b32.xlu0 %v228, 108
      %v282 = vpop.permute.xlu0 %281
      %286 = vrot.lane.b32.xlu0 %v226, 107
      %v287 = vpop.permute.xlu0 %286
      %288 = vrot.lane.b32.xlu0 %v227, 107
      %v289 = vpop.permute.xlu0 %288
      %290 = vrot.lane.b32.xlu0 %v228, 107
      %v291 = vpop.permute.xlu0 %290
      %295 = vrot.lane.b32.xlu0 %v226, 106
      %v296 = vpop.permute.xlu0 %295
      %297 = vrot.lane.b32.xlu0 %v227, 106
      %v298 = vpop.permute.xlu0 %297
      %299 = vrot.lane.b32.xlu0 %v228, 106
      %v300 = vpop.permute.xlu0 %299
      %v304 = vld [vmem:[%s1] sm:$0xff]
      %v305 = vld [vmem:[%s1 + $0x8] sm:$0xff]
      %v306 = vld [vmem:[%s1 + $0x10] sm:$0xff]
      %v307 = vld [vmem:[%s1 + $0x18] sm:$0xff]
      %v308 = vld [vmem:[%s1 + $0x20] sm:$0xff]
      %v309 = vld [vmem:[%s1 + $0x28] sm:$0xff]
      %v310 = vld [vmem:[%s1 + $0x30] sm:$0xff]
      %v311 = vld [vmem:[%s1 + $0x38] sm:$0xff]
      %v312 = vld [vmem:[%s1 + $0x40] sm:$0xff]
      %v313 = vld [vmem:[%s1 + $0x48] sm:$0xff]
      %v314 = vld [vmem:[%s1 + $0x50] sm:$0xff]
      %v315 = vld [vmem:[%s1 + $0x58] sm:$0xff]
      %v316 = vld [vmem:[%s2] sm:$0xff]
      %v317 = vld [vmem:[%s2 + $0x8] sm:$0xff]
      %v318 = vld [vmem:[%s2 + $0x10] sm:$0xff]
      %v319 = vld [vmem:[%s2 + $0x18] sm:$0xff]
      %v320 = vld [vmem:[%s2 + $0x20] sm:$0xff]
      %v321 = vld [vmem:[%s2 + $0x28] sm:$0xff]
      %323 = vset.pattern.permute.xlu0 0
      %324 = vperm.xlu0 %323, %v316
      %v325 = vpop.permute.xlu0 %324
      %328 = vset.pattern.permute.xlu0 0
      %329 = vperm.xlu0 %328, %v317
      %v330 = vpop.permute.xlu0 %329
      %333 = vset.pattern.permute.xlu0 0
      %334 = vperm.xlu0 %333, %v318
      %v335 = vpop.permute.xlu0 %334
      %338 = vset.pattern.permute.xlu0 0
      %339 = vperm.xlu0 %338, %v319
      %v340 = vpop.permute.xlu0 %339
      %343 = vset.pattern.permute.xlu0 0
      %344 = vperm.xlu0 %343, %v320
      %v345 = vpop.permute.xlu0 %344
      %348 = vset.pattern.permute.xlu0 0
      %349 = vperm.xlu0 %348, %v321
      %v350 = vpop.permute.xlu0 %349
      %v364 = vunpack.c.l.b16 %v304
      %v365 = vunpack.c.h.b16 %v304
      %v366 = vunpack.c.l.b16 %v305
      %v367 = vunpack.c.h.b16 %v305
      %v368 = vunpack.c.l.b16 %v306
      %v369 = vunpack.c.h.b16 %v306
      %v370 = vunpack.c.l.b16 %v307
      %v371 = vunpack.c.h.b16 %v307
      %v372 = vunpack.c.l.b16 %v308
      %v373 = vunpack.c.h.b16 %v308
      %v374 = vunpack.c.l.b16 %v309
      %v375 = vunpack.c.h.b16 %v309
      %v376 = vunpack.c.l.b16 %v310
      %v377 = vunpack.c.h.b16 %v310
      %v378 = vunpack.c.l.b16 %v311
      %v379 = vunpack.c.h.b16 %v311
      %v380 = vunpack.c.l.b16 %v312
      %v381 = vunpack.c.h.b16 %v312
      %v382 = vunpack.c.l.b16 %v313
      %v383 = vunpack.c.h.b16 %v313
      %v384 = vunpack.c.l.b16 %v314
      %v385 = vunpack.c.h.b16 %v314
      %v386 = vunpack.c.l.b16 %v315
      %v387 = vunpack.c.h.b16 %v315
      %v388 = vpack.c.b16 %v368, %v364
      %v389 = vpack.c.b16 %v369, %v365
      %v390 = vpack.c.b16 %v370, %v366
      %v391 = vpack.c.b16 %v371, %v367
      %v392 = vpack.c.b16 %v376, %v372
      %v393 = vpack.c.b16 %v377, %v373
      %v394 = vpack.c.b16 %v378, %v374
      %v395 = vpack.c.b16 %v379, %v375
      %v396 = vpack.c.b16 %v384, %v380
      %v397 = vpack.c.b16 %v385, %v381
      %v398 = vpack.c.b16 %v386, %v382
      %v399 = vpack.c.b16 %v387, %v383
      %vm409 = vcmask 392192
      %v411 = vsel %vm409, %v391, 0
      %v414 = vsel %vm409, %v395, 0
      %v417 = vsel %vm409, %v399, 0
      %419 = vmatprep.subr.bf16.mxu0 0
      %420 = vmatpush1.bf16.msra.mxu0 %v226
      %421 = vmatprep.subr.bf16.mxu0 0
      %422 = vmatpush1.bf16.msra.mxu0 %v227
      %423 = vmatprep.subr.bf16.mxu0 0
      %424 = vmatpush1.bf16.msra.mxu0 %v228
      %425 = vmatprep.subr.bf16.mxu0 0
      %426 = vmatpush1.bf16.msra.mxu0 %v233
      %427 = vmatprep.subr.bf16.mxu0 0
      %428 = vmatpush1.bf16.msra.mxu0 %v235
      %429 = vmatprep.subr.bf16.mxu0 0
      %430 = vmatpush1.bf16.msra.mxu0 %v237
      %431 = vmatprep.subr.bf16.mxu0 0
      %432 = vmatpush1.bf16.msra.mxu0 %v242
      %433 = vmatprep.subr.bf16.mxu0 0
      %434 = vmatpush1.bf16.msra.mxu0 %v244
      %435 = vmatprep.subr.bf16.mxu0 0
      %436 = vmatpush1.bf16.msra.mxu0 %v246
      %437 = vmatprep.subr.bf16.mxu0 0
      %438 = vmatpush1.bf16.msra.mxu0 %v251
      %439 = vmatprep.subr.bf16.mxu0 0
      %440 = vmatpush1.bf16.msra.mxu0 %v253
      %441 = vmatprep.subr.bf16.mxu0 0
      %442 = vmatpush1.bf16.msra.mxu0 %v255
      %443 = vmatprep.subr.bf16.mxu0 0
      %444 = vmatpush1.bf16.msra.mxu0 %v260
      %445 = vmatprep.subr.bf16.mxu0 0
      %446 = vmatpush1.bf16.msra.mxu0 %v262
      %447 = vmatprep.subr.bf16.mxu0 0
      %448 = vmatpush1.bf16.msra.mxu0 %v264
      %449 = vmatprep.subr.bf16.mxu0 0
      %450 = vmatpush1.bf16.msra.mxu0 %v269
      %451 = vmatprep.mubr.bf16.mxu0 %v389
      %452 = vmatmul.mubr.bf16.gmra.mrb[0].mxu0 %v388
      %v453 = vpop.f32.mrb[0].mxu0
      %v454 = vadd.f32 %v325, %v453
      %v455 = vpop.f32.mrb[0].mxu0
      %v456 = vpop.f32.mrb[0].mxu0
      %v457 = vadd.f32 %v330, %v456
      %v458 = vpop.f32.mrb[0].mxu0
      %459 = vmatprep.mubr.bf16.mxu0 %v393
      %460 = vmatmul.mubr.bf16.gmra.mrb[0].mxu0 %v392
      %v461 = vpop.f32.mrb[0].mxu0
      %v462 = vadd.f32 %v335, %v461
      %v463 = vpop.f32.mrb[0].mxu0
      %v464 = vpop.f32.mrb[0].mxu0
      %v465 = vadd.f32 %v340, %v464
      %v466 = vpop.f32.mrb[0].mxu0
      %467 = vmatprep.mubr.bf16.mxu0 %v397
      %468 = vmatmul.mubr.bf16.gmra.mrb[0].mxu0 %v396
      %v469 = vpop.f32.mrb[0].mxu0
      %v470 = vadd.f32 %v345, %v469
      %v471 = vpop.f32.mrb[0].mxu0
      %v472 = vpop.f32.mrb[0].mxu0
      %v473 = vadd.f32 %v350, %v472
      %v474 = vpop.f32.mrb[0].mxu0
      %475 = vdwg.mxu0
      %476 = vmatprep.subr.bf16.mxu0 0
      %477 = vmatpush1.bf16.msra.mxu0 %v271
      %478 = vmatprep.subr.bf16.mxu0 0
      %479 = vmatpush1.bf16.msra.mxu0 %v273
      %480 = vmatprep.subr.bf16.mxu0 0
      %481 = vmatpush1.bf16.msra.mxu0 %v278
      %482 = vmatprep.subr.bf16.mxu0 0
      %483 = vmatpush1.bf16.msra.mxu0 %v280
      %484 = vmatprep.subr.bf16.mxu0 0
      %485 = vmatpush1.bf16.msra.mxu0 %v282
      %486 = vmatprep.subr.bf16.mxu0 0
      %487 = vmatpush1.bf16.msra.mxu0 %v287
      %488 = vmatprep.subr.bf16.mxu0 0
      %489 = vmatpush1.bf16.msra.mxu0 %v289
      %490 = vmatprep.subr.bf16.mxu0 0
      %491 = vmatpush1.bf16.msra.mxu0 %v291
      %492 = vmatprep.subr.bf16.mxu0 0
      %493 = vmatpush1.bf16.msra.mxu0 %v296
      %494 = vmatprep.subr.bf16.mxu0 0
      %495 = vmatpush1.bf16.msra.mxu0 %v298
      %496 = vmatprep.subr.bf16.mxu0 0
      %497 = vmatpush1.bf16.msra.mxu0 %v300
      %498 = vmatprep.subr.bf16.mxu0 0
      %499 = vmatpush1.bf16.msra.mxu0 0
      %500 = vmatprep.subr.bf16.mxu0 0
      %501 = vmatpush1.bf16.msra.mxu0 0
      %502 = vmatprep.subr.bf16.mxu0 0
      %503 = vmatpush1.bf16.msra.mxu0 0
      %504 = vmatprep.subr.bf16.mxu0 0
      %505 = vmatpush1.bf16.msra.mxu0 0
      %506 = vmatprep.subr.bf16.mxu0 0
      %507 = vmatpush1.bf16.msra.mxu0 0
      %508 = vmatprep.mubr.bf16.mxu0 %v411
      %509 = vmatmul.mubr.bf16.gmra.mrb[0].mxu0 %v390
      %v510 = vpop.f32.mrb[0].mxu0
      %v511 = vadd.f32 %v454, %v510
      %v512 = vpop.f32.mrb[0].mxu0
      %v513 = vpop.f32.mrb[0].mxu0
      %v514 = vadd.f32 %v457, %v513
      %v515 = vpop.f32.mrb[0].mxu0
      %516 = vmatprep.mubr.bf16.mxu0 %v414
      %517 = vmatmul.mubr.bf16.gmra.mrb[0].mxu0 %v394
      %v518 = vpop.f32.mrb[0].mxu0
      %v519 = vadd.f32 %v462, %v518
      %v520 = vpop.f32.mrb[0].mxu0
      %v521 = vpop.f32.mrb[0].mxu0
      %v522 = vadd.f32 %v465, %v521
      %v523 = vpop.f32.mrb[0].mxu0
      %524 = vmatprep.mubr.bf16.mxu0 %v417
      %525 = vmatmul.mubr.bf16.gmra.mrb[0].mxu0 %v398
      %v526 = vpop.f32.mrb[0].mxu0
      %v527 = vadd.f32 %v470, %v526
      %v528 = vpop.f32.mrb[0].mxu0
      %v529 = vpop.f32.mrb[0].mxu0
      %v530 = vadd.f32 %v473, %v529
      %v531 = vpop.f32.mrb[0].mxu0
      %532 = vdwg.mxu0
      %v533 = vmax.f32 %v511, 0.0
      %v534 = vmax.f32 %v514, 0.0
      %v535 = vmax.f32 %v519, 0.0
      %v536 = vmax.f32 %v522, 0.0
      %v537 = vmax.f32 %v527, 0.0
      %v538 = vmax.f32 %v530, 0.0
      %v539 = vpack.c.bf16 %v534, %v533
      %v540 = vpack.c.bf16 %v536, %v535
      %v541 = vpack.c.bf16 %v538, %v537
      %v545 = vunpack.c.l.b16 %v539
      %v546 = vunpack.c.h.b16 %v539
      %v547 = vunpack.c.l.b16 %v540
      %v548 = vunpack.c.h.b16 %v540
      %v549 = vunpack.c.l.b16 %v541
      %v550 = vunpack.c.h.b16 %v541
      %v551 = vpack.c.b16 %v545, %v545
      %v552 = vpack.c.b16 %v546, %v546
      %v553 = vpack.c.b16 %v547, %v547
      %v554 = vpack.c.b16 %v548, %v548
      %v555 = vpack.c.b16 %v549, %v549
      %v556 = vpack.c.b16 %v550, %v550
      %vm563 = vcmask 650240
      %564 = vst.msk [vmem:[%s206] sm:$0xf] %vm563, %v551
      %565 = vst.msk [vmem:[%s206 + $0x4] sm:$0xf] %vm563, %v552
      %566 = vst.msk [vmem:[%s206 + $0x8] sm:$0xf] %vm563, %v553
      %567 = vst.msk [vmem:[%s206 + $0xc] sm:$0xf] %vm563, %v554
      %568 = vst.msk [vmem:[%s206 + $0x10] sm:$0xf] %vm563, %v555
      %569 = vst.msk [vmem:[%s206 + $0x14] sm:$0xf] %vm563, %v556
      %p570 = scmp.lt.s32.totalorder %s18, 1
      %s571 = scalar_select %p570, %s18, 1
      %p572 = scmp.lt.s32.totalorder %s19, 0
      %s573 = scalar_select %p572, %s19, 0
      %s574 = smul.addr %s573, 6
      %s575 = smul.addr %s571, 6
      %s576 = sadd.s32 %s574, %s575
      %s577 = smul.addr %s576, 4
      %s578 = scalar_lea.vmem %s3, %s577
      // Predicated region
      $region33: #{a_call__.8} parent=31 // pred_check
        %p579 = pneg %p116
      $region34: #{a_call__.8} parent=31 // pred_check_branch
        %581 = sbr.rel (%p579) target = $region36
      $region35: #{a_call__.8} parent=31 // pred_region
        _
      $region36: #{a_call__.8} parent=31 // pred_fallthru
        _
    $region32: #{a_call__.8} parent=5 // pred_fallthru
      _
    %p582 = scmp.le.s32.totalorder 2, %s9
    // Predicated region
    $region37: #{a_call__.8} parent=5 // pred_check
      %p583 = pneg %p582
    $region38: #{a_call__.8} parent=5 // pred_check_branch
      %585 = sbr.rel (%p583) target = $region40
    $region39: #{a_call__.8} parent=5 // pred_region
      %s586 = ssub.s32 %s9, 2
      // Predicated region
      $region41: #{a_call__.8} parent=39 // pred_check
        %p587 = pneg %p122
      $region42: #{a_call__.8} parent=39 // pred_check_branch
        %589 = sbr.rel (%p587) target = $region44
      $region43: #{a_call__.8} parent=39 // pred_region
        %p590 = scmp.lt.s32.totalorder %s20, 1
        %s591 = scalar_select %p590, %s20, 1
        %p592 = scmp.lt.s32.totalorder %s21, 0
        %s593 = scalar_select %p592, %s21, 0
        %s594 = smul.addr %s593, 6
        %s595 = smul.addr %s591, 6
        %s596 = sadd.s32 %s594, %s595
        %s597 = smul.addr %s596, 4
        %s598 = scalar_lea.vmem %s3, %s597
      $region44: #{a_call__.8} parent=39 // pred_fallthru
        _
    $region40: #{a_call__.8} parent=5 // pred_fallthru
      _
  $region6: #{a_call__.8} parent=0 // loop_footer
    %s13 = sadd.s32 1, %s9
  $region7: #{a_call__.8} parent=0 // loop_footer_branch
    %8 = sbr.rel target = $region3
  $region8: #{a_call__.8} parent=0 // loop_exit
    _

// kernel: a_call__.9
$region0: #{a_call__.9}
  #allocation0 [shape = 'u32[]', space=smem, size = 0x4, offset = 0x4, fixed_abs, tag = 'smem constant byte address 0x4 - core index']
  #allocation1 [shape = 'u32[144,128]{1,0:T(1,128)}', space=vmem, size = 0x12000, scoped, tag = 'internal scratch']
  %s0 = inlined_call_operand.vmem [shape: bf16[2,1,48,72], index: 0, kind: input, shape index: {}]
  %s1 = inlined_call_operand.vmem [shape: bf16[16,432], index: 1, kind: input, shape index: {}]
  %s2 = inlined_call_operand.vmem [shape: f32[16,1], index: 2, kind: input, shape index: {}]
  %s3 = inlined_call_operand.vmem [shape: f32[2,1,16,48], index: 3, kind: output, shape index: {}]
  %s4 = sld [smem:[#allocation0]]
  $region45: #{a_call__.9} parent=0
    _
  %s6 = ssub.s32 1, %s4
  %s7 = scalar_select 0, %s6, %s4
  loop: start=0, step=1, limit=4
  $region2: #{a_call__.9} parent=0 // loop_pre_header
    _
  $region3: #{a_call__.9} parent=0 // loop_header
    %s9 = sphi 0, %s13
    %p10 = scmp.ge.s32.totalorder %s9, 4
    %s16 = sphi 0, %s28
    %s17 = sphi 0, %s24
    %s18 = sphi 0, %s16
    %s19 = sphi 0, %s17
    %s20 = sphi 0, %s18
    %s21 = sphi 0, %s19
    %s33 = sphi 0, %s35
    %s36 = sphi 0, %s33
    %s37 = sphi 0, %s36
    %s53 = sphi 0, %s37
    %s57 = sphi 0, %s57
    %s59 = sphi 0, %s57
    %s60 = sphi 0, %s59
    %s74 = sphi 0, %s60
    %s78 = sphi 0, %s78
    %s80 = sphi 0, %s78
    %s81 = sphi 0, %s80
    %s95 = sphi 0, %s81
    %s103 = sphi 0, %s105
    %s106 = sphi 0, %s103
    %s107 = sphi 0, %s106
    %s123 = sphi 0, %s107
  $region4: #{a_call__.9} parent=0 // loop_header_branch
    %12 = sbr.rel (%p10) target = $region8
  $region5: #{a_call__.9} parent=0 // loop_body
    %s14 = ssub.s32 %s9, 1
    %s15 = ssub.s32 %s9, 2
    %s22 = sadd.s32 1, %s17
    %p23 = scmp.ge.s32.totalorder %s22, 1
    %s24 = scalar_select %p23, 0, %s22
    %s25 = sadd.s32 1, %s16
    %s26 = scalar_select %p23, %s25, %s16
    %p27 = scmp.ge.s32.totalorder %s26, 2
    %s28 = scalar_select %p27, 0, %s26
    %s29 = ssub.s32 %s16, %s28
    %s30 = ssub.s32 %s17, %s24
    %s31 = sor.u32 %s29, %s30
    %p32 = scmp.eq.s32.totalorder %s31, 0
    %s34 = sadd.s32 %s33, 1
    %s35 = scalar_select %p32, %s33, %s34
    %p38 = pneg %p32
    %p39 = scmp.eq.s32.totalorder %s9, 1
    %p40 = por %p38, %p39
    %p41 = scmp.ne.s32.totalorder %s33, %s36
    %p42 = scmp.eq.s32.totalorder %s9, 0
    %p43 = por %p41, %p42
    %p44 = scmp.ne.s32.totalorder %s33, %s36
    %p45 = scmp.eq.s32.totalorder %s14, 1
    %p46 = por %p44, %p45
    %p47 = scmp.ne.s32.totalorder %s36, %s37
    %p48 = scmp.eq.s32.totalorder %s14, 0
    %p49 = por %p47, %p48
    %p50 = scmp.ne.s32.totalorder %s36, %s37
    %p51 = scmp.eq.s32.totalorder %s15, 1
    %p52 = por %p50, %p51
    %p54 = scmp.ne.s32.totalorder %s37, %s53
    %p55 = scmp.eq.s32.totalorder %s15, 0
    %p56 = por %p54, %p55
    %s58 = sadd.s32 %s57, 1
    %p61 = scmp.eq.s32.totalorder %s9, 1
    %p62 = scmp.ne.s32.totalorder %s57, %s59
    %p63 = scmp.eq.s32.totalorder %s9, 0
    %p64 = por %p62, %p63
    %p65 = scmp.ne.s32.totalorder %s57, %s59
    %p66 = scmp.eq.s32.totalorder %s14, 1
    %p67 = por %p65, %p66
    %p68 = scmp.ne.s32.totalorder %s59, %s60
    %p69 = scmp.eq.s32.totalorder %s14, 0
    %p70 = por %p68, %p69
    %p71 = scmp.ne.s32.totalorder %s59, %s60
    %p72 = scmp.eq.s32.totalorder %s15, 1
    %p73 = por %p71, %p72
    %p75 = scmp.ne.s32.totalorder %s60, %s74
    %p76 = scmp.eq.s32.totalorder %s15, 0
    %p77 = por %p75, %p76
    %s79 = sadd.s32 %s78, 1
    %p82 = scmp.eq.s32.totalorder %s9, 1
    %p83 = scmp.ne.s32.totalorder %s78, %s80
    %p84 = scmp.eq.s32.totalorder %s9, 0
    %p85 = por %p83, %p84
    %p86 = scmp.ne.s32.totalorder %s78, %s80
    %p87 = scmp.eq.s32.totalorder %s14, 1
    %p88 = por %p86, %p87
    %p89 = scmp.ne.s32.totalorder %s80, %s81
    %p90 = scmp.eq.s32.totalorder %s14, 0
    %p91 = por %p89, %p90
    %p92 = scmp.ne.s32.totalorder %s80, %s81
    %p93 = scmp.eq.s32.totalorder %s15, 1
    %p94 = por %p92, %p93
    %p96 = scmp.ne.s32.totalorder %s81, %s95
    %p97 = scmp.eq.s32.totalorder %s15, 0
    %p98 = por %p96, %p97
    %s99 = ssub.s32 %s16, %s28
    %s100 = ssub.s32 %s17, %s24
    %s101 = sor.u32 %s99, %s100
    %p102 = scmp.eq.s32.totalorder %s101, 0
    %s104 = sadd.s32 %s103, 1
    %s105 = scalar_select %p102, %s103, %s104
    %p108 = pneg %p102
    %p109 = scmp.eq.s32.totalorder %s9, 1
    %p110 = por %p108, %p109
    %p111 = scmp.ne.s32.totalorder %s103, %s106
    %p112 = scmp.eq.s32.totalorder %s9, 0
    %p113 = por %p111, %p112
    %p114 = scmp.ne.s32.totalorder %s103, %s106
    %p115 = scmp.eq.s32.totalorder %s14, 1
    %p116 = por %p114, %p115
    %p117 = scmp.ne.s32.totalorder %s106, %s107
    %p118 = scmp.eq.s32.totalorder %s14, 0
    %p119 = por %p117, %p118
    %p120 = scmp.ne.s32.totalorder %s106, %s107
    %p121 = scmp.eq.s32.totalorder %s15, 1
    %p122 = por %p120, %p121
    %p124 = scmp.ne.s32.totalorder %s107, %s123
    %p125 = scmp.eq.s32.totalorder %s15, 0
    %p126 = por %p124, %p125
    %p127 = scmp.le.s32.totalorder 1, %s9
    %p128 = scmp.lt.s32.totalorder %s9, 3
    %p129 = pnand %p127, %p128
    %p130 = pneg %p129
    // Predicated region
    $region9: #{a_call__.9} parent=5 // pred_check
      _
    $region10: #{a_call__.9} parent=5 // pred_check_branch
      %132 = sbr.rel (%p129) target = $region12
    $region11: #{a_call__.9} parent=5 // pred_region
      %s133 = ssub.s32 %s9, 1
      // Predicated region
      $region13: #{a_call__.9} parent=11 // pred_check
        %p134 = pneg %p70
      $region14: #{a_call__.9} parent=11 // pred_check_branch
        %136 = sbr.rel (%p134) target = $region16
      $region15: #{a_call__.9} parent=11 // pred_region
        _
      $region16: #{a_call__.9} parent=11 // pred_fallthru
        _
      // Predicated region
      $region17: #{a_call__.9} parent=11 // pred_check
        %p137 = pneg %p91
      $region18: #{a_call__.9} parent=11 // pred_check_branch
        %139 = sbr.rel (%p137) target = $region20
      $region19: #{a_call__.9} parent=11 // pred_region
        _
      $region20: #{a_call__.9} parent=11 // pred_fallthru
        _
    $region12: #{a_call__.9} parent=5 // pred_fallthru
      _
    %p140 = scmp.lt.s32.totalorder %s9, 2
    // Predicated region
    $region21: #{a_call__.9} parent=5 // pred_check
      %p141 = pneg %p140
    $region22: #{a_call__.9} parent=5 // pred_check_branch
      %143 = sbr.rel (%p141) target = $region24
    $region23: #{a_call__.9} parent=5 // pred_region
      // Predicated region
      $region25: #{a_call__.9} parent=23 // pred_check
        %p144 = pneg %p43
      $region26: #{a_call__.9} parent=23 // pred_check_branch
        %146 = sbr.rel (%p144) target = $region28
      $region27: #{a_call__.9} parent=23 // pred_region
        %p147 = scmp.lt.s32.totalorder %s16, 1
        %s148 = scalar_select %p147, %s16, 1
        %p149 = scmp.lt.s32.totalorder %s17, 0
        %s150 = scalar_select %p149, %s17, 0
        %s151 = smul.addr %s150, 6
        %s152 = smul.addr %s148, 6
        %s153 = sadd.s32 %s151, %s152
        %s154 = smul.addr %s153, 4
        %s155 = scalar_lea.vmem %s0, %s154
      $region28: #{a_call__.9} parent=23 // pred_fallthru
        _
    $region24: #{a_call__.9} parent=5 // pred_fallthru
      _
    %p156 = scmp.le.s32.totalorder 1, %s9
    %p157 = scmp.lt.s32.totalorder %s9, 3
    %p158 = pnand %p156, %p157
    %p159 = pneg %p158
    // Predicated region
    $region29: #{a_call__.9} parent=5 // pred_check
      _
    $region30: #{a_call__.9} parent=5 // pred_check_branch
      %161 = sbr.rel (%p158) target = $region32
    $region31: #{a_call__.9} parent=5 // pred_region
      %s162 = ssub.s32 %s9, 1
      %p163 = scmp.lt.s32.totalorder %s18, 1
      %s164 = scalar_select %p163, %s18, 1
      %p165 = scmp.lt.s32.totalorder %s19, 0
      %s166 = scalar_select %p165, %s19, 0
      %s167 = smul.addr %s166, 6
      %s168 = smul.addr %s164, 6
      %s169 = sadd.s32 %s167, %s168
      %s170 = smul.addr %s169, 4
      %s171 = scalar_lea.vmem %s0, %s170
      %p172 = pneg %p49
      %p173 = pneg %p46
      %p174 = pneg %p70
      %p175 = pneg %p67
      %p176 = pneg %p91
      %p177 = pneg %p88
      %p178 = pneg %p119
      %p179 = pneg %p116
      %p180 = scmp.lt.s32.totalorder %s18, 1
      %s181 = scalar_select %p180, %s18, 1
      %p182 = scmp.lt.s32.totalorder %s19, 0
      %s183 = scalar_select %p182, %s19, 0
      %s184 = smul.addr %s183, 2
      %s185 = smul.addr %s181, 2
      %s186 = sadd.s32 %s184, %s185
      %s187 = smul.addr %s186, 8
      %s188 = scalar_lea.vmem %s3, %s187
      %p189 = scmp.lt.s32.totalorder %s18, 1
      %s190 = scalar_select %p189, %s18, 1
      %p191 = scmp.lt.s32.totalorder %s19, 0
      %s192 = scalar_select %p191, %s19, 0
      %s193 = smul.addr %s192, 6
      %s194 = smul.addr %s190, 6
      %s195 = sadd.s32 %s193, %s194
      %s196 = smul.addr %s195, 4
      %s197 = scalar_lea.vmem %s0, %s196
      %p198 = scmp.lt.s32.totalorder %s18, 1
      %s199 = scalar_select %p198, %s18, 1
      %p200 = scmp.lt.s32.totalorder %s19, 0
      %s201 = scalar_select %p200, %s19, 0
      %s202 = smul.addr %s201, 2
      %s203 = smul.addr %s199, 2
      %s204 = sadd.s32 %s202, %s203
      %s205 = smul.addr %s204, 8
      %s206 = scalar_lea.vmem %s3, %s205
      %v208 = vld [vmem:[%s197] sm:$0xf]
      %v209 = vld [vmem:[%s197 + $0x4] sm:$0xf]
      %v210 = vld [vmem:[%s197 + $0x8] sm:$0xf]
      %v211 = vld [vmem:[%s197 + $0xc] sm:$0xf]
      %v212 = vld [vmem:[%s197 + $0x10] sm:$0xf]
      %v213 = vld [vmem:[%s197 + $0x14] sm:$0xf]
      %v220 = vunpack.c.l.b16 %v208
      %v221 = vunpack.c.l.b16 %v209
      %v222 = vunpack.c.l.b16 %v210
      %v223 = vunpack.c.l.b16 %v211
      %v224 = vunpack.c.l.b16 %v212
      %v225 = vunpack.c.l.b16 %v213
      %v226 = vpack.c.b16 %v221, %v220
      %v227 = vpack.c.b16 %v223, %v222
      %v228 = vpack.c.b16 %v225, %v224
      %232 = vrot.lane.b32.xlu0 %v226, 127
      %v233 = vpop.permute.xlu0 %232
      %234 = vrot.lane.b32.xlu0 %v227, 127
      %v235 = vpop.permute.xlu0 %234
      %236 = vrot.lane.b32.xlu0 %v228, 127
      %v237 = vpop.permute.xlu0 %236
      %241 = vrot.lane.b32.xlu0 %v226, 126
      %v242 = vpop.permute.xlu0 %241
      %243 = vrot.lane.b32.xlu0 %v227, 126
      %v244 = vpop.permute.xlu0 %243
      %245 = vrot.lane.b32.xlu0 %v228, 126
      %v246 = vpop.permute.xlu0 %245
      %250 = vrot.lane.b32.xlu0 %v226, 120
      %v251 = vpop.permute.xlu0 %250
      %252 = vrot.lane.b32.xlu0 %v227, 120
      %v253 = vpop.permute.xlu0 %252
      %254 = vrot.lane.b32.xlu0 %v228, 120
      %v255 = vpop.permute.xlu0 %254
      %259 = vrot.lane.b32.xlu0 %v226, 119
      %v260 = vpop.permute.xlu0 %259
      %261 = vrot.lane.b32.xlu0 %v227, 119
      %v262 = vpop.permute.xlu0 %261
      %263 = vrot.lane.b32.xlu0 %v228, 119
      %v264 = vpop.permute.xlu0 %263
      %268 = vrot.lane.b32.xlu0 %v226, 118
      %v269 = vpop.permute.xlu0 %268
      %270 = vrot.lane.b32.xlu0 %v227, 118
      %v271 = vpop.permute.xlu0 %270
      %272 = vrot.lane.b32.xlu0 %v228, 118
      %v273 = vpop.permute.xlu0 %272
      %277 = vrot.lane.b32.xlu0 %v226, 112
      %v278 = vpop.permute.xlu0 %277
      %279 = vrot.lane.b32.xlu0 %v227, 112
      %v280 = vpop.permute.xlu0 %279
      %281 = vrot.lane.b32.xlu0 %v228, 112
      %v282 = vpop.permute.xlu0 %281
      %286 = vrot.lane.b32.xlu0 %v226, 111
      %v287 = vpop.permute.xlu0 %286
      %288 = vrot.lane.b32.xlu0 %v227, 111
      %v289 = vpop.permute.xlu0 %288
      %290 = vrot.lane.b32.xlu0 %v228, 111
      %v291 = vpop.permute.xlu0 %290
      %295 = vrot.lane.b32.xlu0 %v226, 110
      %v296 = vpop.permute.xlu0 %295
      %297 = vrot.lane.b32.xlu0 %v227, 110
      %v298 = vpop.permute.xlu0 %297
      %299 = vrot.lane.b32.xlu0 %v228, 110
      %v300 = vpop.permute.xlu0 %299
      %v304 = vld [vmem:[%s1] sm:$0xff]
      %v305 = vld [vmem:[%s1 + $0x8] sm:$0xff]
      %v306 = vld [vmem:[%s1 + $0x10] sm:$0xff]
      %v307 = vld [vmem:[%s1 + $0x18] sm:$0xff]
      %v308 = vld [vmem:[%s2] sm:$0xff]
      %v309 = vld [vmem:[%s2 + $0x8] sm:$0xff]
      %311 = vset.pattern.permute.xlu0 0
      %312 = vperm.xlu0 %311, %v308
      %v313 = vpop.permute.xlu0 %312
      %316 = vset.pattern.permute.xlu0 0
      %317 = vperm.xlu0 %316, %v309
      %v318 = vpop.permute.xlu0 %317
      %v324 = vunpack.c.l.b16 %v304
      %v325 = vunpack.c.h.b16 %v304
      %v326 = vunpack.c.l.b16 %v305
      %v327 = vunpack.c.h.b16 %v305
      %v328 = vunpack.c.l.b16 %v306
      %v329 = vunpack.c.h.b16 %v306
      %v330 = vunpack.c.l.b16 %v307
      %v331 = vunpack.c.h.b16 %v307
      %v332 = vpack.c.b16 %v328, %v324
      %v333 = vpack.c.b16 %v329, %v325
      %v334 = vpack.c.b16 %v330, %v326
      %v335 = vpack.c.b16 %v331, %v327
      %vm339 = vcmask 392192
      %v341 = vsel %vm339, %v335, 0
      %343 = vmatprep.subr.bf16.mxu0 0
      %344 = vmatpush1.bf16.msra.mxu0 %v226
      %345 = vmatprep.subr.bf16.mxu0 0
      %346 = vmatpush1.bf16.msra.mxu0 %v227
      %347 = vmatprep.subr.bf16.mxu0 0
      %348 = vmatpush1.bf16.msra.mxu0 %v228
      %349 = vmatprep.subr.bf16.mxu0 0
      %350 = vmatpush1.bf16.msra.mxu0 %v233
      %351 = vmatprep.subr.bf16.mxu0 0
      %352 = vmatpush1.bf16.msra.mxu0 %v235
      %353 = vmatprep.subr.bf16.mxu0 0
      %354 = vmatpush1.bf16.msra.mxu0 %v237
      %355 = vmatprep.subr.bf16.mxu0 0
      %356 = vmatpush1.bf16.msra.mxu0 %v242
      %357 = vmatprep.subr.bf16.mxu0 0
      %358 = vmatpush1.bf16.msra.mxu0 %v244
      %359 = vmatprep.subr.bf16.mxu0 0
      %360 = vmatpush1.bf16.msra.mxu0 %v246
      %361 = vmatprep.subr.bf16.mxu0 0
      %362 = vmatpush1.bf16.msra.mxu0 %v251
      %363 = vmatprep.subr.bf16.mxu0 0
      %364 = vmatpush1.bf16.msra.mxu0 %v253
      %365 = vmatprep.subr.bf16.mxu0 0
      %366 = vmatpush1.bf16.msra.mxu0 %v255
      %367 = vmatprep.subr.bf16.mxu0 0
      %368 = vmatpush1.bf16.msra.mxu0 %v260
      %369 = vmatprep.subr.bf16.mxu0 0
      %370 = vmatpush1.bf16.msra.mxu0 %v262
      %371 = vmatprep.subr.bf16.mxu0 0
      %372 = vmatpush1.bf16.msra.mxu0 %v264
      %373 = vmatprep.subr.bf16.mxu0 0
      %374 = vmatpush1.bf16.msra.mxu0 %v269
      %375 = vmatprep.mubr.bf16.mxu0 %v333
      %376 = vmatmul.mubr.bf16.gmra.mrb[0].mxu0 %v332
      %v377 = vpop.f32.mrb[0].mxu0
      %v378 = vadd.f32 %v313, %v377
      %v379 = vpop.f32.mrb[0].mxu0
      %v380 = vpop.f32.mrb[0].mxu0
      %v381 = vadd.f32 %v318, %v380
      %v382 = vpop.f32.mrb[0].mxu0
      %383 = vdwg.mxu0
      %384 = vmatprep.subr.bf16.mxu0 0
      %385 = vmatpush1.bf16.msra.mxu0 %v271
      %386 = vmatprep.subr.bf16.mxu0 0
      %387 = vmatpush1.bf16.msra.mxu0 %v273
      %388 = vmatprep.subr.bf16.mxu0 0
      %389 = vmatpush1.bf16.msra.mxu0 %v278
      %390 = vmatprep.subr.bf16.mxu0 0
      %391 = vmatpush1.bf16.msra.mxu0 %v280
      %392 = vmatprep.subr.bf16.mxu0 0
      %393 = vmatpush1.bf16.msra.mxu0 %v282
      %394 = vmatprep.subr.bf16.mxu0 0
      %395 = vmatpush1.bf16.msra.mxu0 %v287
      %396 = vmatprep.subr.bf16.mxu0 0
      %397 = vmatpush1.bf16.msra.mxu0 %v289
      %398 = vmatprep.subr.bf16.mxu0 0
      %399 = vmatpush1.bf16.msra.mxu0 %v291
      %400 = vmatprep.subr.bf16.mxu0 0
      %401 = vmatpush1.bf16.msra.mxu0 %v296
      %402 = vmatprep.subr.bf16.mxu0 0
      %403 = vmatpush1.bf16.msra.mxu0 %v298
      %404 = vmatprep.subr.bf16.mxu0 0
      %405 = vmatpush1.bf16.msra.mxu0 %v300
      %406 = vmatprep.subr.bf16.mxu0 0
      %407 = vmatpush1.bf16.msra.mxu0 0
      %408 = vmatprep.subr.bf16.mxu0 0
      %409 = vmatpush1.bf16.msra.mxu0 0
      %410 = vmatprep.subr.bf16.mxu0 0
      %411 = vmatpush1.bf16.msra.mxu0 0
      %412 = vmatprep.subr.bf16.mxu0 0
      %413 = vmatpush1.bf16.msra.mxu0 0
      %414 = vmatprep.subr.bf16.mxu0 0
      %415 = vmatpush1.bf16.msra.mxu0 0
      %416 = vmatprep.mubr.bf16.mxu0 %v341
      %417 = vmatmul.mubr.bf16.gmra.mrb[0].mxu0 %v334
      %v418 = vpop.f32.mrb[0].mxu0
      %v419 = vadd.f32 %v378, %v418
      %v420 = vpop.f32.mrb[0].mxu0
      %v421 = vpop.f32.mrb[0].mxu0
      %v422 = vadd.f32 %v381, %v421
      %v423 = vpop.f32.mrb[0].mxu0
      %424 = vdwg.mxu0
      %425 = vst.msk [vmem:[%s206] sm:$0xff] %vm339, %v419
      %426 = vst.msk [vmem:[%s206 + $0x8] sm:$0xff] %vm339, %v422
      %p427 = scmp.lt.s32.totalorder %s18, 1
      %s428 = scalar_select %p427, %s18, 1
      %p429 = scmp.lt.s32.totalorder %s19, 0
      %s430 = scalar_select %p429, %s19, 0
      %s431 = smul.addr %s430, 2
      %s432 = smul.addr %s428, 2
      %s433 = sadd.s32 %s431, %s432
      %s434 = smul.addr %s433, 8
      %s435 = scalar_lea.vmem %s3, %s434
      // Predicated region
      $region33: #{a_call__.9} parent=31 // pred_check
        %p436 = pneg %p116
      $region34: #{a_call__.9} parent=31 // pred_check_branch
        %438 = sbr.rel (%p436) target = $region36
      $region35: #{a_call__.9} parent=31 // pred_region
        _
      $region36: #{a_call__.9} parent=31 // pred_fallthru
        _
    $region32: #{a_call__.9} parent=5 // pred_fallthru
      _
    %p439 = scmp.le.s32.totalorder 2, %s9
    // Predicated region
    $region37: #{a_call__.9} parent=5 // pred_check
      %p440 = pneg %p439
    $region38: #{a_call__.9} parent=5 // pred_check_branch
      %442 = sbr.rel (%p440) target = $region40
    $region39: #{a_call__.9} parent=5 // pred_region
      %s443 = ssub.s32 %s9, 2
      // Predicated region
      $region41: #{a_call__.9} parent=39 // pred_check
        %p444 = pneg %p122
      $region42: #{a_call__.9} parent=39 // pred_check_branch
        %446 = sbr.rel (%p444) target = $region44
      $region43: #{a_call__.9} parent=39 // pred_region
        %p447 = scmp.lt.s32.totalorder %s20, 1
        %s448 = scalar_select %p447, %s20, 1
        %p449 = scmp.lt.s32.totalorder %s21, 0
        %s450 = scalar_select %p449, %s21, 0
        %s451 = smul.addr %s450, 2
        %s452 = smul.addr %s448, 2
        %s453 = sadd.s32 %s451, %s452
        %s454 = smul.addr %s453, 8
        %s455 = scalar_lea.vmem %s3, %s454
      $region44: #{a_call__.9} parent=39 // pred_fallthru
        _
    $region40: #{a_call__.9} parent=5 // pred_fallthru
      _
  $region6: #{a_call__.9} parent=0 // loop_footer
    %s13 = sadd.s32 1, %s9
  $region7: #{a_call__.9} parent=0 // loop_footer_branch
    %8 = sbr.rel target = $region3
  $region8: #{a_call__.9} parent=0 // loop_exit
    _

</llo_original>
